<compile_context>
chip_gen: v7x
topology: tpu7x:2x2x1
jax: 0.10.0
libtpu: 0.0.40
codegen_flags: <defaults>
</compile_context>

<pallas_src>
import jax
import jax.numpy as jnp
from jax import lax
from jax.experimental import pallas as pl
from jax.experimental.pallas import tpu as pltpu


# ---------------------------------------------------------------------------
# Pallas kernels
# ---------------------------------------------------------------------------
def _conv_pool_relu_kernel(p_ref, w_ref, b_ref, o_ref):
    """Fused conv (im2col matmul) + 2x2 max-pool + bias + ReLU for one M tile.

    p_ref : (4, TILE_M, K) bf16  -- 4 = positions of each 2x2 pool window
    w_ref : (K, C)         bf16
    b_ref : (1, C)         f32
    o_ref : (TILE_M, C)    bf16
    """
    w = w_ref[...]
    # Four independent MXU matmuls (one per pool position), then a tree max:
    # no data dependency between consecutive MXU pushes.
    d0 = jnp.dot(p_ref[0], w, preferred_element_type=jnp.float32)
    d1 = jnp.dot(p_ref[1], w, preferred_element_type=jnp.float32)
    d2 = jnp.dot(p_ref[2], w, preferred_element_type=jnp.float32)
    d3 = jnp.dot(p_ref[3], w, preferred_element_type=jnp.float32)
    m = jnp.maximum(jnp.maximum(d0, d1), jnp.maximum(d2, d3))
    # max over the pool window commutes with the shared bias add and ReLU.
    o_ref[...] = jnp.maximum(m + b_ref[...], 0.0).astype(o_ref.dtype)


def _mlp_head_kernel(x_ref, w1_ref, b1_ref, w2_ref, b2_ref, o_ref):
    """Fused fc1 + ReLU + fc2 + sigmoid for one batch tile (f32 accumulation)."""
    h = jnp.dot(x_ref[...], w1_ref[...],
                preferred_element_type=jnp.float32) + b1_ref[...]
    h = jnp.maximum(h, 0.0)
    z = jnp.dot(h.astype(w2_ref.dtype), w2_ref[...],
                preferred_element_type=jnp.float32) + b2_ref[...]
    o_ref[...] = 1.0 / (1.0 + jnp.exp(-z))


# ---------------------------------------------------------------------------
# pallas_call wrappers (tiled over rows, parallel grid axis)
# ---------------------------------------------------------------------------
def conv_pool_relu(patches, w_col, bias, *, tile_m=1024):
    P, M, K = patches.shape            # M is always a multiple of 8 here
    c_out = w_col.shape[1]
    tm = min(M, tile_m)
    grid = (pl.cdiv(M, tm),)
    cost = pl.CostEstimate(
        flops=2 * P * M * K * c_out,
        transcendentals=0,
        bytes_accessed=(P * M * K + K * c_out + M * c_out) * 2 + c_out * 4,
    )
    return pl.pallas_call(
        _conv_pool_relu_kernel,
        out_shape=jax.ShapeDtypeStruct((M, c_out), jnp.bfloat16),
        grid=grid,
        in_specs=[
            pl.BlockSpec((P, tm, K), lambda i: (0, i, 0)),
            pl.BlockSpec((K, c_out), lambda i: (0, 0)),
            pl.BlockSpec((1, c_out), lambda i: (0, 0)),
        ],
        out_specs=pl.BlockSpec((tm, c_out), lambda i: (i, 0)),
        compiler_params=pltpu.CompilerParams(
            dimension_semantics=("parallel",)),
        cost_estimate=cost,
    )(patches, w_col, bias.reshape(1, c_out).astype(jnp.float32))


def mlp_head(x, w1, b1, w2, b2, *, tile_n=512):
    n, d_in = x.shape
    d_hid = w1.shape[1]
    d_out = w2.shape[1]
    tn = min(n, tile_n)
    grid = (pl.cdiv(n, tn),)
    cost = pl.CostEstimate(
        flops=2 * n * d_in * d_hid + 2 * n * d_hid * d_out,
        transcendentals=n * d_out,
        bytes_accessed=(n * d_in + d_in * d_hid + d_hid * d_out) * 2
                       + (d_hid + d_out) * 4 + n * d_out * 4,
    )
    # TODO(synk): d_out=1 output is a lane-sparse (masked) store; padding it to
    # >=8 lanes and slicing outside is a possible micro-opt (negligible here).
    return pl.pallas_call(
        _mlp_head_kernel,
        out_shape=jax.ShapeDtypeStruct((n, d_out), jnp.float32),
        grid=grid,
        in_specs=[
            pl.BlockSpec((tn, d_in), lambda i: (i, 0)),
            pl.BlockSpec((d_in, d_hid), lambda i: (0, 0)),
            pl.BlockSpec((1, d_hid), lambda i: (0, 0)),
            pl.BlockSpec((d_hid, d_out), lambda i: (0, 0)),
            pl.BlockSpec((1, d_out), lambda i: (0, 0)),
        ],
        out_specs=pl.BlockSpec((tn, d_out), lambda i: (i, 0)),
        compiler_params=pltpu.CompilerParams(
            dimension_semantics=("parallel",)),
        cost_estimate=cost,
    )(x, w1, b1.reshape(1, -1).astype(jnp.float32),
      w2, b2.reshape(1, -1).astype(jnp.float32))


# ---------------------------------------------------------------------------
# Plain-JAX glue: im2col (with pool-window grouping), weight relayout
# ---------------------------------------------------------------------------
def _im2col_pooled(x_nhwc, ksize=5, pool=2):
    """-> (pool*pool, N*Hp*Wp, ksize*ksize*C); K ordered (dy, dx, c_in)."""
    n, h, w, c = x_nhwc.shape
    ho, wo = h - ksize + 1, w - ksize + 1
    hp, wp = ho // pool, wo // pool
    taps = []
    for dy in range(ksize):
        for dx in range(ksize):
            taps.append(x_nhwc[:, dy:dy + ho, dx:dx + wo, :])
    pat = jnp.concatenate(taps, axis=-1)                      # (N, Ho, Wo, K)
    groups = []
    for py in range(pool):
        for px in range(pool):
            sub = pat[:, py::pool, px::pool, :]               # (N, Hp, Wp, K)
            groups.append(sub.reshape(n * hp * wp, ksize * ksize * c))
    return jnp.stack(groups, axis=0)


def _conv_w_to_col(w_oihw):
    """(C_out, C_in, kH, kW) -> (kH*kW*C_in, C_out), K ordered (dy, dx, c_in)."""
    return jnp.transpose(w_oihw, (2, 3, 1, 0)).reshape(-1, w_oihw.shape[0])


@jax.jit
def discriminator_forward(x_nchw, params):
    w1, b1, w2, b2, fw1, fb1, fw2, fb2 = params
    n = x_nchw.shape[0]
    bf16 = jnp.bfloat16

    # One-time parameter relayout (constant-folded/fused under jit):
    #  * conv weights -> im2col column layout, bf16 (MXU-native).
    #  * fc1 rows permuted from torch's (c,h,w) flatten order to the NHWC
    #    (h,w,c) order the conv2 kernel emits, so the runtime NCHW transpose of
    #    y2 disappears and the flatten is a free reshape.
    w1c = _conv_w_to_col(w1).astype(bf16)
    w2c = _conv_w_to_col(w2).astype(bf16)
    fw1p = fw1.reshape(20, 4, 4, 50).transpose(1, 2, 0, 3).reshape(320, 50)
    fw1p = fw1p.astype(bf16)
    fw2b = fw2.astype(bf16)

    x_nhwc = jnp.transpose(x_nchw, (0, 2, 3, 1)).astype(bf16)   # (N, 28, 28, 1)

    # conv1 -> maxpool(2) -> ReLU
    # TODO(synk): im2col is still plain-JAX gathers through HBM; building the
    # 25 taps from a raw NHWC block inside the kernel would cut HBM bytes more.
    p1 = _im2col_pooled(x_nhwc)                               # (4, N*144, 25)
    y1 = conv_pool_relu(p1, w1c, b1)                          # (N*144, 10) bf16
    y1 = y1.reshape(n, 12, 12, 10)

    # conv2 -> Dropout2d -> maxpool(2) -> ReLU
    # TODO(synk): Dropout2d treated as identity (inference/eval mode); training
    # mode random channel dropout is not implemented.
    p2 = _im2col_pooled(y1)                                   # (4, N*16, 250)
    y2 = conv_pool_relu(p2, w2c, b2)                          # (N*16, 20) bf16

    # Rows of y2 are (n, h, w)-ordered with channels last, so a plain reshape
    # gives the NHWC flatten that matches the permuted fc1 weights (no transpose).
    xf = y2.reshape(n, 320)

    # fc1 -> ReLU -> fc2 -> sigmoid (fused kernel)
    return mlp_head(xf, fw1p, fb1, fw2b, fb2)


# ---------------------------------------------------------------------------
# Deterministic parameter init (PyTorch-style uniform bounds), reference check
# ---------------------------------------------------------------------------
def init_params(key):
    ks = jax.random.split(key, 8)

    def u(k, shape, fan_in):
        bound = 1.0 / float(fan_in) ** 0.5
        return jax.random.uniform(k, shape, jnp.float32, -bound, bound)

    w1 = u(ks[0], (10, 1, 5, 5), 25)
    b1 = u(ks[1], (10,), 25)
    w2 = u(ks[2], (20, 10, 5, 5), 250)
    b2 = u(ks[3], (20,), 250)
    fw1 = u(ks[4], (320, 50), 320)     # stored as (in, out); used as x @ fw1
    fb1 = u(ks[5], (50,), 320)
    fw2 = u(ks[6], (50, 1), 50)
    fb2 = u(ks[7], (1,), 50)
    return (w1, b1, w2, b2, fw1, fb1, fw2, fb2)


def reference_forward(x, params):
    """Pure-JAX f32 reference mirroring the PyTorch forward exactly."""
    w1, b1, w2, b2, fw1, fb1, fw2, fb2 = params
    hp = lax.Precision.HIGHEST

    def conv(a, w):
        return lax.conv_general_dilated(a, w, (1, 1), 'VALID',
                                        dimension_numbers=('NCHW', 'OIHW', 'NCHW'),
                                        precision=hp)

    def pool(a):
        return lax.reduce_window(a, -jnp.inf, lax.max,
                                 (1, 1, 2, 2), (1, 1, 2, 2), 'VALID')

    y = jax.nn.relu(pool(conv(x, w1) + b1[None, :, None, None]))
    y = jax.nn.relu(pool(conv(y, w2) + b2[None, :, None, None]))
    y = y.reshape(-1, 320)
    y = jax.nn.relu(jnp.dot(y, fw1, precision=hp) + fb1)
    y = jnp.dot(y, fw2, precision=hp) + fb2
    return jax.nn.sigmoid(y)


if __name__ == "__main__":
    key = jax.random.PRNGKey(0)
    pkey, xkey = jax.random.split(key)
    params = init_params(pkey)
    x = jax.random.normal(xkey, (2, 1, 28, 28), jnp.float32)

    out = discriminator_forward(x, params)
    out = jax.block_until_ready(out)

    ref = reference_forward(x, params)
    assert out.shape == (2, 1), out.shape
    assert bool(jnp.all(jnp.isfinite(out)))
    # bf16 MXU inputs / bf16 inter-layer activations with f32 accumulation ->
    # relaxed tolerance vs. the all-f32 HIGHEST-precision reference.
    assert bool(jnp.allclose(out, ref, atol=2e-2, rtol=2e-2)), (out, ref)
    print("KERNEL_OK")
</pallas_src>

<mosaic_0001>
module attributes {stable_mosaic.version = 11 : i64} {
  func.func @_conv_pool_relu_kernel(%arg0: i32, %arg1: memref<4x288x25xbf16, #tpu.memory_space<vmem>>, %arg2: memref<25x10xbf16, #tpu.memory_space<vmem>>, %arg3: memref<1x10xf32, #tpu.memory_space<vmem>>, %arg4: memref<288x10xbf16, #tpu.memory_space<vmem>>) attributes {dimension_semantics = [#tpu.dimension_semantics<parallel>], iteration_bounds = array<i64: 1>, scalar_prefetch = 0 : i64, scratch_operands = 0 : i64, tpu.core_type = #tpu.core_type<tc>, window_params = [{transform_indices = @transform_0, window_bounds = array<i64: 4, 288, 25>}, {pipeline_mode = #tpu.pipeline_mode<synchronous>, transform_indices = @transform_1, window_bounds = array<i64: 25, 10>}, {pipeline_mode = #tpu.pipeline_mode<synchronous>, transform_indices = @transform_2, window_bounds = array<i64: 1, 10>}, {transform_indices = @transform_3, window_bounds = array<i64: 288, 10>}]} {
    %c0 = arith.constant 0 : index
    %c0_0 = arith.constant 0 : index
    %0 = vector.load %arg2[%c0, %c0_0] : memref<25x10xbf16, #tpu.memory_space<vmem>>, vector<25x10xbf16>
    %c0_1 = arith.constant 0 : index
    %c0_2 = arith.constant 0 : index
    %c0_3 = arith.constant 0 : index
    %1 = vector.load %arg1[%c0_1, %c0_2, %c0_3] : memref<4x288x25xbf16, #tpu.memory_space<vmem>>, vector<1x288x25xbf16>
    %2 = vector.shape_cast %1 : vector<1x288x25xbf16> to vector<288x25xbf16>
    %cst = arith.constant dense<0.000000e+00> : vector<288x10xf32>
    %3 = tpu.matmul %2, %0, %cst {dimension_numbers = #tpu.dot_dimension_numbers<[1], [0], [0], [1], [0, 0, 1, 1], [], []>} : vector<288x25xbf16>, vector<25x10xbf16>, vector<288x10xf32> -> vector<288x10xf32>
    %c1 = arith.constant 1 : index
    %c0_4 = arith.constant 0 : index
    %c0_5 = arith.constant 0 : index
    %4 = vector.load %arg1[%c1, %c0_4, %c0_5] : memref<4x288x25xbf16, #tpu.memory_space<vmem>>, vector<1x288x25xbf16>
    %5 = vector.shape_cast %4 : vector<1x288x25xbf16> to vector<288x25xbf16>
    %cst_6 = arith.constant dense<0.000000e+00> : vector<288x10xf32>
    %6 = tpu.matmul %5, %0, %cst_6 {dimension_numbers = #tpu.dot_dimension_numbers<[1], [0], [0], [1], [0, 0, 1, 1], [], []>} : vector<288x25xbf16>, vector<25x10xbf16>, vector<288x10xf32> -> vector<288x10xf32>
    %c2 = arith.constant 2 : index
    %c0_7 = arith.constant 0 : index
    %c0_8 = arith.constant 0 : index
    %7 = vector.load %arg1[%c2, %c0_7, %c0_8] : memref<4x288x25xbf16, #tpu.memory_space<vmem>>, vector<1x288x25xbf16>
    %8 = vector.shape_cast %7 : vector<1x288x25xbf16> to vector<288x25xbf16>
    %cst_9 = arith.constant dense<0.000000e+00> : vector<288x10xf32>
    %9 = tpu.matmul %8, %0, %cst_9 {dimension_numbers = #tpu.dot_dimension_numbers<[1], [0], [0], [1], [0, 0, 1, 1], [], []>} : vector<288x25xbf16>, vector<25x10xbf16>, vector<288x10xf32> -> vector<288x10xf32>
    %c3 = arith.constant 3 : index
    %c0_10 = arith.constant 0 : index
    %c0_11 = arith.constant 0 : index
    %10 = vector.load %arg1[%c3, %c0_10, %c0_11] : memref<4x288x25xbf16, #tpu.memory_space<vmem>>, vector<1x288x25xbf16>
    %11 = vector.shape_cast %10 : vector<1x288x25xbf16> to vector<288x25xbf16>
    %cst_12 = arith.constant dense<0.000000e+00> : vector<288x10xf32>
    %12 = tpu.matmul %11, %0, %cst_12 {dimension_numbers = #tpu.dot_dimension_numbers<[1], [0], [0], [1], [0, 0, 1, 1], [], []>} : vector<288x25xbf16>, vector<25x10xbf16>, vector<288x10xf32> -> vector<288x10xf32>
    %13 = arith.maximumf %3, %6 : vector<288x10xf32>
    %14 = arith.maximumf %9, %12 : vector<288x10xf32>
    %15 = arith.maximumf %13, %14 : vector<288x10xf32>
    %c0_13 = arith.constant 0 : index
    %c0_14 = arith.constant 0 : index
    %16 = vector.load %arg3[%c0_13, %c0_14] : memref<1x10xf32, #tpu.memory_space<vmem>>, vector<1x10xf32>
    %17 = vector.broadcast %16 : vector<1x10xf32> to vector<288x10xf32>
    %18 = arith.addf %15, %17 : vector<288x10xf32>
    %cst_15 = arith.constant 0.000000e+00 : f32
    %19 = vector.broadcast %cst_15 : f32 to vector<288x10xf32>
    %20 = arith.maximumf %18, %19 : vector<288x10xf32>
    %21 = arith.truncf %20 : vector<288x10xf32> to vector<288x10xbf16>
    %c0_16 = arith.constant 0 : index
    %c0_17 = arith.constant 0 : index
    %22 = vector.load %arg4[%c0_16, %c0_17] : memref<288x10xbf16, #tpu.memory_space<vmem>>, vector<288x10xbf16>
    tpu.vector_store %arg4[%c0_16, %c0_17], %21 {strides = array<i32>} : memref<288x10xbf16, #tpu.memory_space<vmem>>, vector<288x10xbf16>,
    return
  }
  func.func @transform_0(%arg0: i32) -> (i32, i32, i32) {
    %c0_i32 = arith.constant 0 : i32
    %c0_i32_0 = arith.constant 0 : i32
    %c0_i32_1 = arith.constant 0 : i32
    return %c0_i32, %arg0, %c0_i32_0 : i32, i32, i32
  }
  func.func @transform_1(%arg0: i32) -> (i32, i32) {
    %c0_i32 = arith.constant 0 : i32
    %c0_i32_0 = arith.constant 0 : i32
    %c0_i32_1 = arith.constant 0 : i32
    return %c0_i32, %c0_i32_0 : i32, i32
  }
  func.func @transform_2(%arg0: i32) -> (i32, i32) {
    %c0_i32 = arith.constant 0 : i32
    %c0_i32_0 = arith.constant 0 : i32
    %c0_i32_1 = arith.constant 0 : i32
    return %c0_i32, %c0_i32_0 : i32, i32
  }
  func.func @transform_3(%arg0: i32) -> (i32, i32) {
    %c0_i32 = arith.constant 0 : i32
    %c0_i32_0 = arith.constant 0 : i32
    return %arg0, %c0_i32 : i32, i32
  }
}

module attributes {stable_mosaic.version = 11 : i64} {
  func.func @_mlp_head_kernel(%arg0: i32, %arg1: memref<2x320xbf16, #tpu.memory_space<vmem>>, %arg2: memref<320x50xbf16, #tpu.memory_space<vmem>>, %arg3: memref<1x50xf32, #tpu.memory_space<vmem>>, %arg4: memref<50x1xbf16, #tpu.memory_space<vmem>>, %arg5: memref<1x1xf32, #tpu.memory_space<vmem>>, %arg6: memref<2x1xf32, #tpu.memory_space<vmem>>) attributes {dimension_semantics = [#tpu.dimension_semantics<parallel>], iteration_bounds = array<i64: 1>, scalar_prefetch = 0 : i64, scratch_operands = 0 : i64, tpu.core_type = #tpu.core_type<tc>, window_params = [{transform_indices = @transform_0, window_bounds = array<i64: 2, 320>}, {pipeline_mode = #tpu.pipeline_mode<synchronous>, transform_indices = @transform_1, window_bounds = array<i64: 320, 50>}, {pipeline_mode = #tpu.pipeline_mode<synchronous>, transform_indices = @transform_2, window_bounds = array<i64: 1, 50>}, {pipeline_mode = #tpu.pipeline_mode<synchronous>, transform_indices = @transform_3, window_bounds = array<i64: 50, 1>}, {pipeline_mode = #tpu.pipeline_mode<synchronous>, transform_indices = @transform_4, window_bounds = array<i64: 1, 1>}, {transform_indices = @transform_5, window_bounds = array<i64: 2, 1>}]} {
    %c0 = arith.constant 0 : index
    %c0_0 = arith.constant 0 : index
    %0 = vector.load %arg1[%c0, %c0_0] : memref<2x320xbf16, #tpu.memory_space<vmem>>, vector<2x320xbf16>
    %c0_1 = arith.constant 0 : index
    %c0_2 = arith.constant 0 : index
    %1 = vector.load %arg2[%c0_1, %c0_2] : memref<320x50xbf16, #tpu.memory_space<vmem>>, vector<320x50xbf16>
    %cst = arith.constant dense<0.000000e+00> : vector<2x50xf32>
    %2 = tpu.matmul %0, %1, %cst {dimension_numbers = #tpu.dot_dimension_numbers<[1], [0], [0], [1], [0, 0, 1, 1], [], []>} : vector<2x320xbf16>, vector<320x50xbf16>, vector<2x50xf32> -> vector<2x50xf32>
    %c0_3 = arith.constant 0 : index
    %c0_4 = arith.constant 0 : index
    %3 = vector.load %arg3[%c0_3, %c0_4] : memref<1x50xf32, #tpu.memory_space<vmem>>, vector<1x50xf32>
    %4 = vector.broadcast %3 : vector<1x50xf32> to vector<2x50xf32>
    %5 = arith.addf %2, %4 : vector<2x50xf32>
    %cst_5 = arith.constant 0.000000e+00 : f32
    %6 = vector.broadcast %cst_5 : f32 to vector<2x50xf32>
    %7 = arith.maximumf %5, %6 : vector<2x50xf32>
    %8 = arith.truncf %7 : vector<2x50xf32> to vector<2x50xbf16>
    %c0_6 = arith.constant 0 : index
    %c0_7 = arith.constant 0 : index
    %9 = vector.load %arg4[%c0_6, %c0_7] : memref<50x1xbf16, #tpu.memory_space<vmem>>, vector<50x1xbf16>
    %cst_8 = arith.constant dense<0.000000e+00> : vector<2x1xf32>
    %10 = tpu.matmul %8, %9, %cst_8 {dimension_numbers = #tpu.dot_dimension_numbers<[1], [0], [0], [1], [0, 0, 1, 1], [], []>} : vector<2x50xbf16>, vector<50x1xbf16>, vector<2x1xf32> -> vector<2x1xf32>
    %c0_9 = arith.constant 0 : index
    %c0_10 = arith.constant 0 : index
    %11 = vector.load %arg5[%c0_9, %c0_10] : memref<1x1xf32, #tpu.memory_space<vmem>>, vector<1x1xf32>
    %12 = vector.broadcast %11 : vector<1x1xf32> to vector<2x1xf32>
    %13 = arith.addf %10, %12 : vector<2x1xf32>
    %cst_11 = arith.constant 0.000000e+00 : f32
    %14 = vector.broadcast %cst_11 : f32 to vector<2x1xf32>
    %15 = arith.subf %14, %13 : vector<2x1xf32>
    %16 = math.exp %15 : vector<2x1xf32>
    %cst_12 = arith.constant 1.000000e+00 : f32
    %17 = vector.broadcast %cst_12 : f32 to vector<2x1xf32>
    %18 = arith.addf %17, %16 : vector<2x1xf32>
    %cst_13 = arith.constant 1.000000e+00 : f32
    %19 = vector.broadcast %cst_13 : f32 to vector<2x1xf32>
    %20 = arith.divf %19, %18 : vector<2x1xf32>
    %c0_14 = arith.constant 0 : index
    %c0_15 = arith.constant 0 : index
    %21 = vector.load %arg6[%c0_14, %c0_15] : memref<2x1xf32, #tpu.memory_space<vmem>>, vector<2x1xf32>
    tpu.vector_store %arg6[%c0_14, %c0_15], %20 {strides = array<i32>} : memref<2x1xf32, #tpu.memory_space<vmem>>, vector<2x1xf32>,
    return
  }
  func.func @transform_0(%arg0: i32) -> (i32, i32) {
    %c0_i32 = arith.constant 0 : i32
    %c0_i32_0 = arith.constant 0 : i32
    return %arg0, %c0_i32 : i32, i32
  }
  func.func @transform_1(%arg0: i32) -> (i32, i32) {
    %c0_i32 = arith.constant 0 : i32
    %c0_i32_0 = arith.constant 0 : i32
    %c0_i32_1 = arith.constant 0 : i32
    return %c0_i32, %c0_i32_0 : i32, i32
  }
  func.func @transform_2(%arg0: i32) -> (i32, i32) {
    %c0_i32 = arith.constant 0 : i32
    %c0_i32_0 = arith.constant 0 : i32
    %c0_i32_1 = arith.constant 0 : i32
    return %c0_i32, %c0_i32_0 : i32, i32
  }
  func.func @transform_3(%arg0: i32) -> (i32, i32) {
    %c0_i32 = arith.constant 0 : i32
    %c0_i32_0 = arith.constant 0 : i32
    %c0_i32_1 = arith.constant 0 : i32
    return %c0_i32, %c0_i32_0 : i32, i32
  }
  func.func @transform_4(%arg0: i32) -> (i32, i32) {
    %c0_i32 = arith.constant 0 : i32
    %c0_i32_0 = arith.constant 0 : i32
    %c0_i32_1 = arith.constant 0 : i32
    return %c0_i32, %c0_i32_0 : i32, i32
  }
  func.func @transform_5(%arg0: i32) -> (i32, i32) {
    %c0_i32 = arith.constant 0 : i32
    %c0_i32_0 = arith.constant 0 : i32
    return %arg0, %c0_i32 : i32, i32
  }
}

module attributes {stable_mosaic.version = 11 : i64} {
  func.func @_conv_pool_relu_kernel(%arg0: i32, %arg1: memref<4x32x250xbf16, #tpu.memory_space<vmem>>, %arg2: memref<250x20xbf16, #tpu.memory_space<vmem>>, %arg3: memref<1x20xf32, #tpu.memory_space<vmem>>, %arg4: memref<32x20xbf16, #tpu.memory_space<vmem>>) attributes {dimension_semantics = [#tpu.dimension_semantics<parallel>], iteration_bounds = array<i64: 1>, scalar_prefetch = 0 : i64, scratch_operands = 0 : i64, tpu.core_type = #tpu.core_type<tc>, window_params = [{transform_indices = @transform_0, window_bounds = array<i64: 4, 32, 250>}, {pipeline_mode = #tpu.pipeline_mode<synchronous>, transform_indices = @transform_1, window_bounds = array<i64: 250, 20>}, {pipeline_mode = #tpu.pipeline_mode<synchronous>, transform_indices = @transform_2, window_bounds = array<i64: 1, 20>}, {transform_indices = @transform_3, window_bounds = array<i64: 32, 20>}]} {
    %c0 = arith.constant 0 : index
    %c0_0 = arith.constant 0 : index
    %0 = vector.load %arg2[%c0, %c0_0] : memref<250x20xbf16, #tpu.memory_space<vmem>>, vector<250x20xbf16>
    %c0_1 = arith.constant 0 : index
    %c0_2 = arith.constant 0 : index
    %c0_3 = arith.constant 0 : index
    %1 = vector.load %arg1[%c0_1, %c0_2, %c0_3] : memref<4x32x250xbf16, #tpu.memory_space<vmem>>, vector<1x32x250xbf16>
    %2 = vector.shape_cast %1 : vector<1x32x250xbf16> to vector<32x250xbf16>
    %cst = arith.constant dense<0.000000e+00> : vector<32x20xf32>
    %3 = tpu.matmul %2, %0, %cst {dimension_numbers = #tpu.dot_dimension_numbers<[1], [0], [0], [1], [0, 0, 1, 1], [], []>} : vector<32x250xbf16>, vector<250x20xbf16>, vector<32x20xf32> -> vector<32x20xf32>
    %c1 = arith.constant 1 : index
    %c0_4 = arith.constant 0 : index
    %c0_5 = arith.constant 0 : index
    %4 = vector.load %arg1[%c1, %c0_4, %c0_5] : memref<4x32x250xbf16, #tpu.memory_space<vmem>>, vector<1x32x250xbf16>
    %5 = vector.shape_cast %4 : vector<1x32x250xbf16> to vector<32x250xbf16>
    %cst_6 = arith.constant dense<0.000000e+00> : vector<32x20xf32>
    %6 = tpu.matmul %5, %0, %cst_6 {dimension_numbers = #tpu.dot_dimension_numbers<[1], [0], [0], [1], [0, 0, 1, 1], [], []>} : vector<32x250xbf16>, vector<250x20xbf16>, vector<32x20xf32> -> vector<32x20xf32>
    %c2 = arith.constant 2 : index
    %c0_7 = arith.constant 0 : index
    %c0_8 = arith.constant 0 : index
    %7 = vector.load %arg1[%c2, %c0_7, %c0_8] : memref<4x32x250xbf16, #tpu.memory_space<vmem>>, vector<1x32x250xbf16>
    %8 = vector.shape_cast %7 : vector<1x32x250xbf16> to vector<32x250xbf16>
    %cst_9 = arith.constant dense<0.000000e+00> : vector<32x20xf32>
    %9 = tpu.matmul %8, %0, %cst_9 {dimension_numbers = #tpu.dot_dimension_numbers<[1], [0], [0], [1], [0, 0, 1, 1], [], []>} : vector<32x250xbf16>, vector<250x20xbf16>, vector<32x20xf32> -> vector<32x20xf32>
    %c3 = arith.constant 3 : index
    %c0_10 = arith.constant 0 : index
    %c0_11 = arith.constant 0 : index
    %10 = vector.load %arg1[%c3, %c0_10, %c0_11] : memref<4x32x250xbf16, #tpu.memory_space<vmem>>, vector<1x32x250xbf16>
    %11 = vector.shape_cast %10 : vector<1x32x250xbf16> to vector<32x250xbf16>
    %cst_12 = arith.constant dense<0.000000e+00> : vector<32x20xf32>
    %12 = tpu.matmul %11, %0, %cst_12 {dimension_numbers = #tpu.dot_dimension_numbers<[1], [0], [0], [1], [0, 0, 1, 1], [], []>} : vector<32x250xbf16>, vector<250x20xbf16>, vector<32x20xf32> -> vector<32x20xf32>
    %13 = arith.maximumf %3, %6 : vector<32x20xf32>
    %14 = arith.maximumf %9, %12 : vector<32x20xf32>
    %15 = arith.maximumf %13, %14 : vector<32x20xf32>
    %c0_13 = arith.constant 0 : index
    %c0_14 = arith.constant 0 : index
    %16 = vector.load %arg3[%c0_13, %c0_14] : memref<1x20xf32, #tpu.memory_space<vmem>>, vector<1x20xf32>
    %17 = vector.broadcast %16 : vector<1x20xf32> to vector<32x20xf32>
    %18 = arith.addf %15, %17 : vector<32x20xf32>
    %cst_15 = arith.constant 0.000000e+00 : f32
    %19 = vector.broadcast %cst_15 : f32 to vector<32x20xf32>
    %20 = arith.maximumf %18, %19 : vector<32x20xf32>
    %21 = arith.truncf %20 : vector<32x20xf32> to vector<32x20xbf16>
    %c0_16 = arith.constant 0 : index
    %c0_17 = arith.constant 0 : index
    %22 = vector.load %arg4[%c0_16, %c0_17] : memref<32x20xbf16, #tpu.memory_space<vmem>>, vector<32x20xbf16>
    tpu.vector_store %arg4[%c0_16, %c0_17], %21 {strides = array<i32>} : memref<32x20xbf16, #tpu.memory_space<vmem>>, vector<32x20xbf16>,
    return
  }
  func.func @transform_0(%arg0: i32) -> (i32, i32, i32) {
    %c0_i32 = arith.constant 0 : i32
    %c0_i32_0 = arith.constant 0 : i32
    %c0_i32_1 = arith.constant 0 : i32
    return %c0_i32, %arg0, %c0_i32_0 : i32, i32, i32
  }
  func.func @transform_1(%arg0: i32) -> (i32, i32) {
    %c0_i32 = arith.constant 0 : i32
    %c0_i32_0 = arith.constant 0 : i32
    %c0_i32_1 = arith.constant 0 : i32
    return %c0_i32, %c0_i32_0 : i32, i32
  }
  func.func @transform_2(%arg0: i32) -> (i32, i32) {
    %c0_i32 = arith.constant 0 : i32
    %c0_i32_0 = arith.constant 0 : i32
    %c0_i32_1 = arith.constant 0 : i32
    return %c0_i32, %c0_i32_0 : i32, i32
  }
  func.func @transform_3(%arg0: i32) -> (i32, i32) {
    %c0_i32 = arith.constant 0 : i32
    %c0_i32_0 = arith.constant 0 : i32
    return %arg0, %c0_i32 : i32, i32
  }
}

</mosaic_0001>

<llo_original>
// kernel: discriminator_forward.3
$region0: #{discriminator_forward.3}
  #allocation0 [shape = 'u32[]', space=smem, size = 0x4, offset = 0x4, fixed_abs, tag = 'smem constant byte address 0x4 - core index']
  #allocation1 [shape = 'u32[144,128]{1,0:T(1,128)}', space=vmem, size = 0x12000, scoped, tag = 'internal scratch']
  %s0 = inlined_call_operand.vmem [shape: bf16[4,288,25], index: 0, kind: input, shape index: {}]
  %s1 = inlined_call_operand.vmem [shape: bf16[25,10], index: 1, kind: input, shape index: {}]
  %s2 = inlined_call_operand.vmem [shape: f32[1,10], index: 2, kind: input, shape index: {}]
  %s3 = inlined_call_operand.vmem [shape: bf16[288,10], index: 3, kind: output, shape index: {}]
  %s4 = sld [smem:[#allocation0]]
  $region22: #{discriminator_forward.3} parent=0
    _
  %s6 = ssub.s32 1, %s4
  %s7 = scalar_select 0, %s6, %s4
  // Predicated region
  $region2: #{discriminator_forward.3} parent=0 // pred_check
    _
  $region3: #{discriminator_forward.3} parent=0 // pred_check_branch
    %9 = sbr.rel (0) target = $region5
  $region4: #{discriminator_forward.3} parent=0 // pred_region
    _
  $region5: #{discriminator_forward.3} parent=0 // pred_fallthru
    _
  // Predicated region
  $region6: #{discriminator_forward.3} parent=0 // pred_check
    _
  $region7: #{discriminator_forward.3} parent=0 // pred_check_branch
    %11 = sbr.rel (0) target = $region9
  $region8: #{discriminator_forward.3} parent=0 // pred_region
    _
  $region9: #{discriminator_forward.3} parent=0 // pred_fallthru
    _
  // Predicated region
  $region10: #{discriminator_forward.3} parent=0 // pred_check
    _
  $region11: #{discriminator_forward.3} parent=0 // pred_check_branch
    %13 = sbr.rel (0) target = $region13
  $region12: #{discriminator_forward.3} parent=0 // pred_region
    _
  $region13: #{discriminator_forward.3} parent=0 // pred_fallthru
    _
  %v15 = vld [vmem:[%s1] sm:$0xf]
  %v16 = vld [vmem:[%s1 + $0x4] sm:$0xf]
  %v17 = vld [vmem:[%s1 + $0x8] sm:$0xf]
  %v18 = vld [vmem:[%s1 + $0xc] sm:$0x1]
  %v19 = vld [vmem:[%s0] sm:$0xf]
  %v20 = vld [vmem:[%s0 + $0x4] sm:$0xf]
  %v21 = vld [vmem:[%s0 + $0x8] sm:$0xf]
  %v22 = vld [vmem:[%s0 + $0xc] sm:$0xf]
  %v23 = vld [vmem:[%s0 + $0x10] sm:$0xf]
  %v24 = vld [vmem:[%s0 + $0x14] sm:$0xf]
  %v25 = vld [vmem:[%s0 + $0x18] sm:$0xf]
  %v26 = vld [vmem:[%s0 + $0x1c] sm:$0xf]
  %v27 = vld [vmem:[%s0 + $0x20] sm:$0xf]
  %v28 = vld [vmem:[%s0 + $0x24] sm:$0xf]
  %v29 = vld [vmem:[%s0 + $0x28] sm:$0xf]
  %v30 = vld [vmem:[%s0 + $0x2c] sm:$0xf]
  %v31 = vld [vmem:[%s0 + $0x30] sm:$0xf]
  %v32 = vld [vmem:[%s0 + $0x34] sm:$0xf]
  %v33 = vld [vmem:[%s0 + $0x38] sm:$0xf]
  %v34 = vld [vmem:[%s0 + $0x3c] sm:$0xf]
  %v35 = vld [vmem:[%s0 + $0x40] sm:$0xf]
  %v36 = vld [vmem:[%s0 + $0x44] sm:$0xf]
  %v37 = vld [vmem:[%s0 + $0x48] sm:$0xf]
  %v38 = vld [vmem:[%s0 + $0x4c] sm:$0xf]
  %v39 = vld [vmem:[%s0 + $0x50] sm:$0xf]
  %v40 = vld [vmem:[%s0 + $0x54] sm:$0xf]
  %v41 = vld [vmem:[%s0 + $0x58] sm:$0xf]
  %v42 = vld [vmem:[%s0 + $0x5c] sm:$0xf]
  %v43 = vld [vmem:[%s0 + $0x60] sm:$0xf]
  %v44 = vld [vmem:[%s0 + $0x64] sm:$0xf]
  %v45 = vld [vmem:[%s0 + $0x68] sm:$0xf]
  %v46 = vld [vmem:[%s0 + $0x6c] sm:$0xf]
  %v47 = vld [vmem:[%s0 + $0x70] sm:$0xf]
  %v48 = vld [vmem:[%s0 + $0x74] sm:$0xf]
  %v49 = vld [vmem:[%s0 + $0x78] sm:$0xf]
  %v50 = vld [vmem:[%s0 + $0x7c] sm:$0xf]
  %v51 = vld [vmem:[%s0 + $0x80] sm:$0xf]
  %v52 = vld [vmem:[%s0 + $0x84] sm:$0xf]
  %v53 = vld [vmem:[%s0 + $0x88] sm:$0xf]
  %v54 = vld [vmem:[%s0 + $0x8c] sm:$0xf]
  %v91 = vunpack.c.l.b16 %v19
  %v92 = vunpack.c.l.b16 %v20
  %v93 = vunpack.c.l.b16 %v21
  %v94 = vunpack.c.l.b16 %v22
  %v95 = vunpack.c.l.b16 %v23
  %v96 = vunpack.c.l.b16 %v24
  %v97 = vunpack.c.l.b16 %v25
  %v98 = vunpack.c.l.b16 %v26
  %v99 = vunpack.c.l.b16 %v27
  %v100 = vunpack.c.l.b16 %v28
  %v101 = vunpack.c.l.b16 %v29
  %v102 = vunpack.c.l.b16 %v30
  %v103 = vunpack.c.l.b16 %v31
  %v104 = vunpack.c.l.b16 %v32
  %v105 = vunpack.c.l.b16 %v33
  %v106 = vunpack.c.l.b16 %v34
  %v107 = vunpack.c.l.b16 %v35
  %v108 = vunpack.c.l.b16 %v36
  %v109 = vunpack.c.l.b16 %v37
  %v110 = vunpack.c.l.b16 %v38
  %v111 = vunpack.c.l.b16 %v39
  %v112 = vunpack.c.l.b16 %v40
  %v113 = vunpack.c.l.b16 %v41
  %v114 = vunpack.c.l.b16 %v42
  %v115 = vunpack.c.l.b16 %v43
  %v116 = vunpack.c.l.b16 %v44
  %v117 = vunpack.c.l.b16 %v45
  %v118 = vunpack.c.l.b16 %v46
  %v119 = vunpack.c.l.b16 %v47
  %v120 = vunpack.c.l.b16 %v48
  %v121 = vunpack.c.l.b16 %v49
  %v122 = vunpack.c.l.b16 %v50
  %v123 = vunpack.c.l.b16 %v51
  %v124 = vunpack.c.l.b16 %v52
  %v125 = vunpack.c.l.b16 %v53
  %v126 = vunpack.c.l.b16 %v54
  %v127 = vpack.c.b16 %v92, %v91
  %v128 = vpack.c.b16 %v94, %v93
  %v129 = vpack.c.b16 %v96, %v95
  %v130 = vpack.c.b16 %v98, %v97
  %v131 = vpack.c.b16 %v100, %v99
  %v132 = vpack.c.b16 %v102, %v101
  %v133 = vpack.c.b16 %v104, %v103
  %v134 = vpack.c.b16 %v106, %v105
  %v135 = vpack.c.b16 %v108, %v107
  %v136 = vpack.c.b16 %v110, %v109
  %v137 = vpack.c.b16 %v112, %v111
  %v138 = vpack.c.b16 %v114, %v113
  %v139 = vpack.c.b16 %v116, %v115
  %v140 = vpack.c.b16 %v118, %v117
  %v141 = vpack.c.b16 %v120, %v119
  %v142 = vpack.c.b16 %v122, %v121
  %v143 = vpack.c.b16 %v124, %v123
  %v144 = vpack.c.b16 %v126, %v125
  %v149 = vunpack.c.l.b16 %v15
  %v150 = vunpack.c.l.b16 %v16
  %v151 = vunpack.c.l.b16 %v17
  %v152 = vunpack.c.l.b16 %v18
  %v153 = vpack.c.b16 %v150, %v149
  %v154 = vpack.c.b16 %v152, %v151
  %vm156 = vcmask 203776
  %v158 = vsel %vm156, %v127, 0
  %v161 = vsel %vm156, %v128, 0
  %v164 = vsel %vm156, %v129, 0
  %v167 = vsel %vm156, %v130, 0
  %v170 = vsel %vm156, %v131, 0
  %v173 = vsel %vm156, %v132, 0
  %v176 = vsel %vm156, %v133, 0
  %v179 = vsel %vm156, %v134, 0
  %v182 = vsel %vm156, %v135, 0
  %v185 = vsel %vm156, %v136, 0
  %v188 = vsel %vm156, %v137, 0
  %v191 = vsel %vm156, %v138, 0
  %v194 = vsel %vm156, %v139, 0
  %v197 = vsel %vm156, %v140, 0
  %v200 = vsel %vm156, %v141, 0
  %v203 = vsel %vm156, %v142, 0
  %v206 = vsel %vm156, %v143, 0
  %v209 = vsel %vm156, %v144, 0
  %vm211 = vcmask 1043456
  %vm212 = vcmask 1044480
  %v213 = vsel %vm211, 4294967295, 65535
  %v214 = vsel %vm212, %v213, 0
  %v216 = vand.u32 %v154, %v214
  %218 = vmatprep.subr.bf16.mxu0 0
  %219 = vmatpush1.bf16.msra.mxu0 %v153
  %220 = vmatprep.subr.bf16.mxu0 0
  %221 = vmatpush1.bf16.msra.mxu0 %v216
  %222 = vmatprep.subr.bf16.mxu0 0
  %223 = vmatpush1.bf16.msra.mxu0 0
  %224 = vmatprep.subr.bf16.mxu0 0
  %225 = vmatpush1.bf16.msra.mxu0 0
  %226 = vmatprep.subr.bf16.mxu0 0
  %227 = vmatpush1.bf16.msra.mxu0 0
  %228 = vmatprep.subr.bf16.mxu0 0
  %229 = vmatpush1.bf16.msra.mxu0 0
  %230 = vmatprep.subr.bf16.mxu0 0
  %231 = vmatpush1.bf16.msra.mxu0 0
  %232 = vmatprep.subr.bf16.mxu0 0
  %233 = vmatpush1.bf16.msra.mxu0 0
  %234 = vmatprep.subr.bf16.mxu0 0
  %235 = vmatpush1.bf16.msra.mxu0 0
  %236 = vmatprep.subr.bf16.mxu0 0
  %237 = vmatpush1.bf16.msra.mxu0 0
  %238 = vmatprep.subr.bf16.mxu0 0
  %239 = vmatpush1.bf16.msra.mxu0 0
  %240 = vmatprep.subr.bf16.mxu0 0
  %241 = vmatpush1.bf16.msra.mxu0 0
  %242 = vmatprep.subr.bf16.mxu0 0
  %243 = vmatpush1.bf16.msra.mxu0 0
  %244 = vmatprep.subr.bf16.mxu0 0
  %245 = vmatpush1.bf16.msra.mxu0 0
  %246 = vmatprep.subr.bf16.mxu0 0
  %247 = vmatpush1.bf16.msra.mxu0 0
  %248 = vmatprep.subr.bf16.mxu0 0
  %249 = vmatpush1.bf16.msra.mxu0 0
  %250 = vmatprep.mubr.bf16.mxu0 0
  %251 = vmatmul.mubr.bf16.gmra.mrb[0].mxu0 %v158
  %v252 = vpop.f32.mrb[0].mxu0
  %v253 = vadd.f32 0.0, %v252
  %v254 = vpop.f32.mrb[0].mxu0
  %v255 = vpop.f32.mrb[0].mxu0
  %v256 = vadd.f32 0.0, %v255
  %v257 = vpop.f32.mrb[0].mxu0
  %258 = vmatprep.mubr.bf16.mxu0 0
  %259 = vmatmul.mubr.bf16.gmra.mrb[0].mxu0 %v161
  %v260 = vpop.f32.mrb[0].mxu0
  %v261 = vadd.f32 0.0, %v260
  %v262 = vpop.f32.mrb[0].mxu0
  %v263 = vpop.f32.mrb[0].mxu0
  %v264 = vadd.f32 0.0, %v263
  %v265 = vpop.f32.mrb[0].mxu0
  %266 = vmatprep.mubr.bf16.mxu0 0
  %267 = vmatmul.mubr.bf16.gmra.mrb[0].mxu0 %v164
  %v268 = vpop.f32.mrb[0].mxu0
  %v269 = vadd.f32 0.0, %v268
  %v270 = vpop.f32.mrb[0].mxu0
  %v271 = vpop.f32.mrb[0].mxu0
  %v272 = vadd.f32 0.0, %v271
  %v273 = vpop.f32.mrb[0].mxu0
  %274 = vmatprep.mubr.bf16.mxu0 0
  %275 = vmatmul.mubr.bf16.gmra.mrb[0].mxu0 %v167
  %v276 = vpop.f32.mrb[0].mxu0
  %v277 = vadd.f32 0.0, %v276
  %v278 = vpop.f32.mrb[0].mxu0
  %v279 = vpop.f32.mrb[0].mxu0
  %v280 = vadd.f32 0.0, %v279
  %v281 = vpop.f32.mrb[0].mxu0
  %282 = vmatprep.mubr.bf16.mxu0 0
  %283 = vmatmul.mubr.bf16.gmra.mrb[0].mxu0 %v170
  %v284 = vpop.f32.mrb[0].mxu0
  %v285 = vadd.f32 0.0, %v284
  %v286 = vpop.f32.mrb[0].mxu0
  %v287 = vpop.f32.mrb[0].mxu0
  %v288 = vadd.f32 0.0, %v287
  %v289 = vpop.f32.mrb[0].mxu0
  %290 = vmatprep.mubr.bf16.mxu0 0
  %291 = vmatmul.mubr.bf16.gmra.mrb[0].mxu0 %v173
  %v292 = vpop.f32.mrb[0].mxu0
  %v293 = vadd.f32 0.0, %v292
  %v294 = vpop.f32.mrb[0].mxu0
  %v295 = vpop.f32.mrb[0].mxu0
  %v296 = vadd.f32 0.0, %v295
  %v297 = vpop.f32.mrb[0].mxu0
  %298 = vmatprep.mubr.bf16.mxu0 0
  %299 = vmatmul.mubr.bf16.gmra.mrb[0].mxu0 %v176
  %v300 = vpop.f32.mrb[0].mxu0
  %v301 = vadd.f32 0.0, %v300
  %v302 = vpop.f32.mrb[0].mxu0
  %v303 = vpop.f32.mrb[0].mxu0
  %v304 = vadd.f32 0.0, %v303
  %v305 = vpop.f32.mrb[0].mxu0
  %306 = vmatprep.mubr.bf16.mxu0 0
  %307 = vmatmul.mubr.bf16.gmra.mrb[0].mxu0 %v179
  %v308 = vpop.f32.mrb[0].mxu0
  %v309 = vadd.f32 0.0, %v308
  %v310 = vpop.f32.mrb[0].mxu0
  %v311 = vpop.f32.mrb[0].mxu0
  %v312 = vadd.f32 0.0, %v311
  %v313 = vpop.f32.mrb[0].mxu0
  %314 = vmatprep.mubr.bf16.mxu0 0
  %315 = vmatmul.mubr.bf16.gmra.mrb[0].mxu0 %v182
  %v316 = vpop.f32.mrb[0].mxu0
  %v317 = vadd.f32 0.0, %v316
  %v318 = vpop.f32.mrb[0].mxu0
  %v319 = vpop.f32.mrb[0].mxu0
  %v320 = vadd.f32 0.0, %v319
  %v321 = vpop.f32.mrb[0].mxu0
  %322 = vmatprep.mubr.bf16.mxu0 0
  %323 = vmatmul.mubr.bf16.gmra.mrb[0].mxu0 %v185
  %v324 = vpop.f32.mrb[0].mxu0
  %v325 = vadd.f32 0.0, %v324
  %v326 = vpop.f32.mrb[0].mxu0
  %v327 = vpop.f32.mrb[0].mxu0
  %v328 = vadd.f32 0.0, %v327
  %v329 = vpop.f32.mrb[0].mxu0
  %330 = vmatprep.mubr.bf16.mxu0 0
  %331 = vmatmul.mubr.bf16.gmra.mrb[0].mxu0 %v188
  %v332 = vpop.f32.mrb[0].mxu0
  %v333 = vadd.f32 0.0, %v332
  %v334 = vpop.f32.mrb[0].mxu0
  %v335 = vpop.f32.mrb[0].mxu0
  %v336 = vadd.f32 0.0, %v335
  %v337 = vpop.f32.mrb[0].mxu0
  %338 = vmatprep.mubr.bf16.mxu0 0
  %339 = vmatmul.mubr.bf16.gmra.mrb[0].mxu0 %v191
  %v340 = vpop.f32.mrb[0].mxu0
  %v341 = vadd.f32 0.0, %v340
  %v342 = vpop.f32.mrb[0].mxu0
  %v343 = vpop.f32.mrb[0].mxu0
  %v344 = vadd.f32 0.0, %v343
  %v345 = vpop.f32.mrb[0].mxu0
  %346 = vmatprep.mubr.bf16.mxu0 0
  %347 = vmatmul.mubr.bf16.gmra.mrb[0].mxu0 %v194
  %v348 = vpop.f32.mrb[0].mxu0
  %v349 = vadd.f32 0.0, %v348
  %v350 = vpop.f32.mrb[0].mxu0
  %v351 = vpop.f32.mrb[0].mxu0
  %v352 = vadd.f32 0.0, %v351
  %v353 = vpop.f32.mrb[0].mxu0
  %354 = vmatprep.mubr.bf16.mxu0 0
  %355 = vmatmul.mubr.bf16.gmra.mrb[0].mxu0 %v197
  %v356 = vpop.f32.mrb[0].mxu0
  %v357 = vadd.f32 0.0, %v356
  %v358 = vpop.f32.mrb[0].mxu0
  %v359 = vpop.f32.mrb[0].mxu0
  %v360 = vadd.f32 0.0, %v359
  %v361 = vpop.f32.mrb[0].mxu0
  %362 = vmatprep.mubr.bf16.mxu0 0
  %363 = vmatmul.mubr.bf16.gmra.mrb[0].mxu0 %v200
  %v364 = vpop.f32.mrb[0].mxu0
  %v365 = vadd.f32 0.0, %v364
  %v366 = vpop.f32.mrb[0].mxu0
  %v367 = vpop.f32.mrb[0].mxu0
  %v368 = vadd.f32 0.0, %v367
  %v369 = vpop.f32.mrb[0].mxu0
  %370 = vmatprep.mubr.bf16.mxu0 0
  %371 = vmatmul.mubr.bf16.gmra.mrb[0].mxu0 %v203
  %v372 = vpop.f32.mrb[0].mxu0
  %v373 = vadd.f32 0.0, %v372
  %v374 = vpop.f32.mrb[0].mxu0
  %v375 = vpop.f32.mrb[0].mxu0
  %v376 = vadd.f32 0.0, %v375
  %v377 = vpop.f32.mrb[0].mxu0
  %378 = vmatprep.mubr.bf16.mxu0 0
  %379 = vmatmul.mubr.bf16.gmra.mrb[0].mxu0 %v206
  %v380 = vpop.f32.mrb[0].mxu0
  %v381 = vadd.f32 0.0, %v380
  %v382 = vpop.f32.mrb[0].mxu0
  %v383 = vpop.f32.mrb[0].mxu0
  %v384 = vadd.f32 0.0, %v383
  %v385 = vpop.f32.mrb[0].mxu0
  %386 = vmatprep.mubr.bf16.mxu0 0
  %387 = vmatmul.mubr.bf16.gmra.mrb[0].mxu0 %v209
  %v388 = vpop.f32.mrb[0].mxu0
  %v389 = vadd.f32 0.0, %v388
  %v390 = vpop.f32.mrb[0].mxu0
  %v391 = vpop.f32.mrb[0].mxu0
  %v392 = vadd.f32 0.0, %v391
  %v393 = vpop.f32.mrb[0].mxu0
  %394 = vdwg.mxu0
  %s395 = scalar_lea.vmem %s0, 144
  %v396 = vld [vmem:[%s395] sm:$0xf]
  %v397 = vld [vmem:[%s395 + $0x4] sm:$0xf]
  %v398 = vld [vmem:[%s395 + $0x8] sm:$0xf]
  %v399 = vld [vmem:[%s395 + $0xc] sm:$0xf]
  %v400 = vld [vmem:[%s395 + $0x10] sm:$0xf]
  %v401 = vld [vmem:[%s395 + $0x14] sm:$0xf]
  %v402 = vld [vmem:[%s395 + $0x18] sm:$0xf]
  %v403 = vld [vmem:[%s395 + $0x1c] sm:$0xf]
  %v404 = vld [vmem:[%s395 + $0x20] sm:$0xf]
  %v405 = vld [vmem:[%s395 + $0x24] sm:$0xf]
  %v406 = vld [vmem:[%s395 + $0x28] sm:$0xf]
  %v407 = vld [vmem:[%s395 + $0x2c] sm:$0xf]
  %v408 = vld [vmem:[%s395 + $0x30] sm:$0xf]
  %v409 = vld [vmem:[%s395 + $0x34] sm:$0xf]
  %v410 = vld [vmem:[%s395 + $0x38] sm:$0xf]
  %v411 = vld [vmem:[%s395 + $0x3c] sm:$0xf]
  %v412 = vld [vmem:[%s395 + $0x40] sm:$0xf]
  %v413 = vld [vmem:[%s395 + $0x44] sm:$0xf]
  %v414 = vld [vmem:[%s395 + $0x48] sm:$0xf]
  %v415 = vld [vmem:[%s395 + $0x4c] sm:$0xf]
  %v416 = vld [vmem:[%s395 + $0x50] sm:$0xf]
  %v417 = vld [vmem:[%s395 + $0x54] sm:$0xf]
  %v418 = vld [vmem:[%s395 + $0x58] sm:$0xf]
  %v419 = vld [vmem:[%s395 + $0x5c] sm:$0xf]
  %v420 = vld [vmem:[%s395 + $0x60] sm:$0xf]
  %v421 = vld [vmem:[%s395 + $0x64] sm:$0xf]
  %v422 = vld [vmem:[%s395 + $0x68] sm:$0xf]
  %v423 = vld [vmem:[%s395 + $0x6c] sm:$0xf]
  %v424 = vld [vmem:[%s395 + $0x70] sm:$0xf]
  %v425 = vld [vmem:[%s395 + $0x74] sm:$0xf]
  %v426 = vld [vmem:[%s395 + $0x78] sm:$0xf]
  %v427 = vld [vmem:[%s395 + $0x7c] sm:$0xf]
  %v428 = vld [vmem:[%s395 + $0x80] sm:$0xf]
  %v429 = vld [vmem:[%s395 + $0x84] sm:$0xf]
  %v430 = vld [vmem:[%s395 + $0x88] sm:$0xf]
  %v431 = vld [vmem:[%s395 + $0x8c] sm:$0xf]
  %v468 = vunpack.c.l.b16 %v396
  %v469 = vunpack.c.l.b16 %v397
  %v470 = vunpack.c.l.b16 %v398
  %v471 = vunpack.c.l.b16 %v399
  %v472 = vunpack.c.l.b16 %v400
  %v473 = vunpack.c.l.b16 %v401
  %v474 = vunpack.c.l.b16 %v402
  %v475 = vunpack.c.l.b16 %v403
  %v476 = vunpack.c.l.b16 %v404
  %v477 = vunpack.c.l.b16 %v405
  %v478 = vunpack.c.l.b16 %v406
  %v479 = vunpack.c.l.b16 %v407
  %v480 = vunpack.c.l.b16 %v408
  %v481 = vunpack.c.l.b16 %v409
  %v482 = vunpack.c.l.b16 %v410
  %v483 = vunpack.c.l.b16 %v411
  %v484 = vunpack.c.l.b16 %v412
  %v485 = vunpack.c.l.b16 %v413
  %v486 = vunpack.c.l.b16 %v414
  %v487 = vunpack.c.l.b16 %v415
  %v488 = vunpack.c.l.b16 %v416
  %v489 = vunpack.c.l.b16 %v417
  %v490 = vunpack.c.l.b16 %v418
  %v491 = vunpack.c.l.b16 %v419
  %v492 = vunpack.c.l.b16 %v420
  %v493 = vunpack.c.l.b16 %v421
  %v494 = vunpack.c.l.b16 %v422
  %v495 = vunpack.c.l.b16 %v423
  %v496 = vunpack.c.l.b16 %v424
  %v497 = vunpack.c.l.b16 %v425
  %v498 = vunpack.c.l.b16 %v426
  %v499 = vunpack.c.l.b16 %v427
  %v500 = vunpack.c.l.b16 %v428
  %v501 = vunpack.c.l.b16 %v429
  %v502 = vunpack.c.l.b16 %v430
  %v503 = vunpack.c.l.b16 %v431
  %v504 = vpack.c.b16 %v469, %v468
  %v505 = vpack.c.b16 %v471, %v470
  %v506 = vpack.c.b16 %v473, %v472
  %v507 = vpack.c.b16 %v475, %v474
  %v508 = vpack.c.b16 %v477, %v476
  %v509 = vpack.c.b16 %v479, %v478
  %v510 = vpack.c.b16 %v481, %v480
  %v511 = vpack.c.b16 %v483, %v482
  %v512 = vpack.c.b16 %v485, %v484
  %v513 = vpack.c.b16 %v487, %v486
  %v514 = vpack.c.b16 %v489, %v488
  %v515 = vpack.c.b16 %v491, %v490
  %v516 = vpack.c.b16 %v493, %v492
  %v517 = vpack.c.b16 %v495, %v494
  %v518 = vpack.c.b16 %v497, %v496
  %v519 = vpack.c.b16 %v499, %v498
  %v520 = vpack.c.b16 %v501, %v500
  %v521 = vpack.c.b16 %v503, %v502
  %v523 = vsel %vm156, %v504, 0
  %v526 = vsel %vm156, %v505, 0
  %v529 = vsel %vm156, %v506, 0
  %v532 = vsel %vm156, %v507, 0
  %v535 = vsel %vm156, %v508, 0
  %v538 = vsel %vm156, %v509, 0
  %v541 = vsel %vm156, %v510, 0
  %v544 = vsel %vm156, %v511, 0
  %v547 = vsel %vm156, %v512, 0
  %v550 = vsel %vm156, %v513, 0
  %v553 = vsel %vm156, %v514, 0
  %v556 = vsel %vm156, %v515, 0
  %v559 = vsel %vm156, %v516, 0
  %v562 = vsel %vm156, %v517, 0
  %v565 = vsel %vm156, %v518, 0
  %v568 = vsel %vm156, %v519, 0
  %v571 = vsel %vm156, %v520, 0
  %v574 = vsel %vm156, %v521, 0
  %576 = vmatprep.subr.bf16.mxu0 0
  %577 = vmatpush1.bf16.msra.mxu0 %v153
  %578 = vmatprep.subr.bf16.mxu0 0
  %579 = vmatpush1.bf16.msra.mxu0 %v216
  %580 = vmatprep.subr.bf16.mxu0 0
  %581 = vmatpush1.bf16.msra.mxu0 0
  %582 = vmatprep.subr.bf16.mxu0 0
  %583 = vmatpush1.bf16.msra.mxu0 0
  %584 = vmatprep.subr.bf16.mxu0 0
  %585 = vmatpush1.bf16.msra.mxu0 0
  %586 = vmatprep.subr.bf16.mxu0 0
  %587 = vmatpush1.bf16.msra.mxu0 0
  %588 = vmatprep.subr.bf16.mxu0 0
  %589 = vmatpush1.bf16.msra.mxu0 0
  %590 = vmatprep.subr.bf16.mxu0 0
  %591 = vmatpush1.bf16.msra.mxu0 0
  %592 = vmatprep.subr.bf16.mxu0 0
  %593 = vmatpush1.bf16.msra.mxu0 0
  %594 = vmatprep.subr.bf16.mxu0 0
  %595 = vmatpush1.bf16.msra.mxu0 0
  %596 = vmatprep.subr.bf16.mxu0 0
  %597 = vmatpush1.bf16.msra.mxu0 0
  %598 = vmatprep.subr.bf16.mxu0 0
  %599 = vmatpush1.bf16.msra.mxu0 0
  %600 = vmatprep.subr.bf16.mxu0 0
  %601 = vmatpush1.bf16.msra.mxu0 0
  %602 = vmatprep.subr.bf16.mxu0 0
  %603 = vmatpush1.bf16.msra.mxu0 0
  %604 = vmatprep.subr.bf16.mxu0 0
  %605 = vmatpush1.bf16.msra.mxu0 0
  %606 = vmatprep.subr.bf16.mxu0 0
  %607 = vmatpush1.bf16.msra.mxu0 0
  %608 = vmatprep.mubr.bf16.mxu0 0
  %609 = vmatmul.mubr.bf16.gmra.mrb[0].mxu0 %v523
  %v610 = vpop.f32.mrb[0].mxu0
  %v611 = vadd.f32 0.0, %v610
  %v612 = vpop.f32.mrb[0].mxu0
  %v613 = vpop.f32.mrb[0].mxu0
  %v614 = vadd.f32 0.0, %v613
  %v615 = vpop.f32.mrb[0].mxu0
  %616 = vmatprep.mubr.bf16.mxu0 0
  %617 = vmatmul.mubr.bf16.gmra.mrb[0].mxu0 %v526
  %v618 = vpop.f32.mrb[0].mxu0
  %v619 = vadd.f32 0.0, %v618
  %v620 = vpop.f32.mrb[0].mxu0
  %v621 = vpop.f32.mrb[0].mxu0
  %v622 = vadd.f32 0.0, %v621
  %v623 = vpop.f32.mrb[0].mxu0
  %624 = vmatprep.mubr.bf16.mxu0 0
  %625 = vmatmul.mubr.bf16.gmra.mrb[0].mxu0 %v529
  %v626 = vpop.f32.mrb[0].mxu0
  %v627 = vadd.f32 0.0, %v626
  %v628 = vpop.f32.mrb[0].mxu0
  %v629 = vpop.f32.mrb[0].mxu0
  %v630 = vadd.f32 0.0, %v629
  %v631 = vpop.f32.mrb[0].mxu0
  %632 = vmatprep.mubr.bf16.mxu0 0
  %633 = vmatmul.mubr.bf16.gmra.mrb[0].mxu0 %v532
  %v634 = vpop.f32.mrb[0].mxu0
  %v635 = vadd.f32 0.0, %v634
  %v636 = vpop.f32.mrb[0].mxu0
  %v637 = vpop.f32.mrb[0].mxu0
  %v638 = vadd.f32 0.0, %v637
  %v639 = vpop.f32.mrb[0].mxu0
  %640 = vmatprep.mubr.bf16.mxu0 0
  %641 = vmatmul.mubr.bf16.gmra.mrb[0].mxu0 %v535
  %v642 = vpop.f32.mrb[0].mxu0
  %v643 = vadd.f32 0.0, %v642
  %v644 = vpop.f32.mrb[0].mxu0
  %v645 = vpop.f32.mrb[0].mxu0
  %v646 = vadd.f32 0.0, %v645
  %v647 = vpop.f32.mrb[0].mxu0
  %648 = vmatprep.mubr.bf16.mxu0 0
  %649 = vmatmul.mubr.bf16.gmra.mrb[0].mxu0 %v538
  %v650 = vpop.f32.mrb[0].mxu0
  %v651 = vadd.f32 0.0, %v650
  %v652 = vpop.f32.mrb[0].mxu0
  %v653 = vpop.f32.mrb[0].mxu0
  %v654 = vadd.f32 0.0, %v653
  %v655 = vpop.f32.mrb[0].mxu0
  %656 = vmatprep.mubr.bf16.mxu0 0
  %657 = vmatmul.mubr.bf16.gmra.mrb[0].mxu0 %v541
  %v658 = vpop.f32.mrb[0].mxu0
  %v659 = vadd.f32 0.0, %v658
  %v660 = vpop.f32.mrb[0].mxu0
  %v661 = vpop.f32.mrb[0].mxu0
  %v662 = vadd.f32 0.0, %v661
  %v663 = vpop.f32.mrb[0].mxu0
  %664 = vmatprep.mubr.bf16.mxu0 0
  %665 = vmatmul.mubr.bf16.gmra.mrb[0].mxu0 %v544
  %v666 = vpop.f32.mrb[0].mxu0
  %v667 = vadd.f32 0.0, %v666
  %v668 = vpop.f32.mrb[0].mxu0
  %v669 = vpop.f32.mrb[0].mxu0
  %v670 = vadd.f32 0.0, %v669
  %v671 = vpop.f32.mrb[0].mxu0
  %672 = vmatprep.mubr.bf16.mxu0 0
  %673 = vmatmul.mubr.bf16.gmra.mrb[0].mxu0 %v547
  %v674 = vpop.f32.mrb[0].mxu0
  %v675 = vadd.f32 0.0, %v674
  %v676 = vpop.f32.mrb[0].mxu0
  %v677 = vpop.f32.mrb[0].mxu0
  %v678 = vadd.f32 0.0, %v677
  %v679 = vpop.f32.mrb[0].mxu0
  %680 = vmatprep.mubr.bf16.mxu0 0
  %681 = vmatmul.mubr.bf16.gmra.mrb[0].mxu0 %v550
  %v682 = vpop.f32.mrb[0].mxu0
  %v683 = vadd.f32 0.0, %v682
  %v684 = vpop.f32.mrb[0].mxu0
  %v685 = vpop.f32.mrb[0].mxu0
  %v686 = vadd.f32 0.0, %v685
  %v687 = vpop.f32.mrb[0].mxu0
  %688 = vmatprep.mubr.bf16.mxu0 0
  %689 = vmatmul.mubr.bf16.gmra.mrb[0].mxu0 %v553
  %v690 = vpop.f32.mrb[0].mxu0
  %v691 = vadd.f32 0.0, %v690
  %v692 = vpop.f32.mrb[0].mxu0
  %v693 = vpop.f32.mrb[0].mxu0
  %v694 = vadd.f32 0.0, %v693
  %v695 = vpop.f32.mrb[0].mxu0
  %696 = vmatprep.mubr.bf16.mxu0 0
  %697 = vmatmul.mubr.bf16.gmra.mrb[0].mxu0 %v556
  %v698 = vpop.f32.mrb[0].mxu0
  %v699 = vadd.f32 0.0, %v698
  %v700 = vpop.f32.mrb[0].mxu0
  %v701 = vpop.f32.mrb[0].mxu0
  %v702 = vadd.f32 0.0, %v701
  %v703 = vpop.f32.mrb[0].mxu0
  %704 = vmatprep.mubr.bf16.mxu0 0
  %705 = vmatmul.mubr.bf16.gmra.mrb[0].mxu0 %v559
  %v706 = vpop.f32.mrb[0].mxu0
  %v707 = vadd.f32 0.0, %v706
  %v708 = vpop.f32.mrb[0].mxu0
  %v709 = vpop.f32.mrb[0].mxu0
  %v710 = vadd.f32 0.0, %v709
  %v711 = vpop.f32.mrb[0].mxu0
  %712 = vmatprep.mubr.bf16.mxu0 0
  %713 = vmatmul.mubr.bf16.gmra.mrb[0].mxu0 %v562
  %v714 = vpop.f32.mrb[0].mxu0
  %v715 = vadd.f32 0.0, %v714
  %v716 = vpop.f32.mrb[0].mxu0
  %v717 = vpop.f32.mrb[0].mxu0
  %v718 = vadd.f32 0.0, %v717
  %v719 = vpop.f32.mrb[0].mxu0
  %720 = vmatprep.mubr.bf16.mxu0 0
  %721 = vmatmul.mubr.bf16.gmra.mrb[0].mxu0 %v565
  %v722 = vpop.f32.mrb[0].mxu0
  %v723 = vadd.f32 0.0, %v722
  %v724 = vpop.f32.mrb[0].mxu0
  %v725 = vpop.f32.mrb[0].mxu0
  %v726 = vadd.f32 0.0, %v725
  %v727 = vpop.f32.mrb[0].mxu0
  %728 = vmatprep.mubr.bf16.mxu0 0
  %729 = vmatmul.mubr.bf16.gmra.mrb[0].mxu0 %v568
  %v730 = vpop.f32.mrb[0].mxu0
  %v731 = vadd.f32 0.0, %v730
  %v732 = vpop.f32.mrb[0].mxu0
  %v733 = vpop.f32.mrb[0].mxu0
  %v734 = vadd.f32 0.0, %v733
  %v735 = vpop.f32.mrb[0].mxu0
  %736 = vmatprep.mubr.bf16.mxu0 0
  %737 = vmatmul.mubr.bf16.gmra.mrb[0].mxu0 %v571
  %v738 = vpop.f32.mrb[0].mxu0
  %v739 = vadd.f32 0.0, %v738
  %v740 = vpop.f32.mrb[0].mxu0
  %v741 = vpop.f32.mrb[0].mxu0
  %v742 = vadd.f32 0.0, %v741
  %v743 = vpop.f32.mrb[0].mxu0
  %744 = vmatprep.mubr.bf16.mxu0 0
  %745 = vmatmul.mubr.bf16.gmra.mrb[0].mxu0 %v574
  %v746 = vpop.f32.mrb[0].mxu0
  %v747 = vadd.f32 0.0, %v746
  %v748 = vpop.f32.mrb[0].mxu0
  %v749 = vpop.f32.mrb[0].mxu0
  %v750 = vadd.f32 0.0, %v749
  %v751 = vpop.f32.mrb[0].mxu0
  %752 = vdwg.mxu0
  %s753 = scalar_lea.vmem %s0, 288
  %v754 = vld [vmem:[%s753] sm:$0xf]
  %v755 = vld [vmem:[%s753 + $0x4] sm:$0xf]
  %v756 = vld [vmem:[%s753 + $0x8] sm:$0xf]
  %v757 = vld [vmem:[%s753 + $0xc] sm:$0xf]
  %v758 = vld [vmem:[%s753 + $0x10] sm:$0xf]
  %v759 = vld [vmem:[%s753 + $0x14] sm:$0xf]
  %v760 = vld [vmem:[%s753 + $0x18] sm:$0xf]
  %v761 = vld [vmem:[%s753 + $0x1c] sm:$0xf]
  %v762 = vld [vmem:[%s753 + $0x20] sm:$0xf]
  %v763 = vld [vmem:[%s753 + $0x24] sm:$0xf]
  %v764 = vld [vmem:[%s753 + $0x28] sm:$0xf]
  %v765 = vld [vmem:[%s753 + $0x2c] sm:$0xf]
  %v766 = vld [vmem:[%s753 + $0x30] sm:$0xf]
  %v767 = vld [vmem:[%s753 + $0x34] sm:$0xf]
  %v768 = vld [vmem:[%s753 + $0x38] sm:$0xf]
  %v769 = vld [vmem:[%s753 + $0x3c] sm:$0xf]
  %v770 = vld [vmem:[%s753 + $0x40] sm:$0xf]
  %v771 = vld [vmem:[%s753 + $0x44] sm:$0xf]
  %v772 = vld [vmem:[%s753 + $0x48] sm:$0xf]
  %v773 = vld [vmem:[%s753 + $0x4c] sm:$0xf]
  %v774 = vld [vmem:[%s753 + $0x50] sm:$0xf]
  %v775 = vld [vmem:[%s753 + $0x54] sm:$0xf]
  %v776 = vld [vmem:[%s753 + $0x58] sm:$0xf]
  %v777 = vld [vmem:[%s753 + $0x5c] sm:$0xf]
  %v778 = vld [vmem:[%s753 + $0x60] sm:$0xf]
  %v779 = vld [vmem:[%s753 + $0x64] sm:$0xf]
  %v780 = vld [vmem:[%s753 + $0x68] sm:$0xf]
  %v781 = vld [vmem:[%s753 + $0x6c] sm:$0xf]
  %v782 = vld [vmem:[%s753 + $0x70] sm:$0xf]
  %v783 = vld [vmem:[%s753 + $0x74] sm:$0xf]
  %v784 = vld [vmem:[%s753 + $0x78] sm:$0xf]
  %v785 = vld [vmem:[%s753 + $0x7c] sm:$0xf]
  %v786 = vld [vmem:[%s753 + $0x80] sm:$0xf]
  %v787 = vld [vmem:[%s753 + $0x84] sm:$0xf]
  %v788 = vld [vmem:[%s753 + $0x88] sm:$0xf]
  %v789 = vld [vmem:[%s753 + $0x8c] sm:$0xf]
  %v826 = vunpack.c.l.b16 %v754
  %v827 = vunpack.c.l.b16 %v755
  %v828 = vunpack.c.l.b16 %v756
  %v829 = vunpack.c.l.b16 %v757
  %v830 = vunpack.c.l.b16 %v758
  %v831 = vunpack.c.l.b16 %v759
  %v832 = vunpack.c.l.b16 %v760
  %v833 = vunpack.c.l.b16 %v761
  %v834 = vunpack.c.l.b16 %v762
  %v835 = vunpack.c.l.b16 %v763
  %v836 = vunpack.c.l.b16 %v764
  %v837 = vunpack.c.l.b16 %v765
  %v838 = vunpack.c.l.b16 %v766
  %v839 = vunpack.c.l.b16 %v767
  %v840 = vunpack.c.l.b16 %v768
  %v841 = vunpack.c.l.b16 %v769
  %v842 = vunpack.c.l.b16 %v770
  %v843 = vunpack.c.l.b16 %v771
  %v844 = vunpack.c.l.b16 %v772
  %v845 = vunpack.c.l.b16 %v773
  %v846 = vunpack.c.l.b16 %v774
  %v847 = vunpack.c.l.b16 %v775
  %v848 = vunpack.c.l.b16 %v776
  %v849 = vunpack.c.l.b16 %v777
  %v850 = vunpack.c.l.b16 %v778
  %v851 = vunpack.c.l.b16 %v779
  %v852 = vunpack.c.l.b16 %v780
  %v853 = vunpack.c.l.b16 %v781
  %v854 = vunpack.c.l.b16 %v782
  %v855 = vunpack.c.l.b16 %v783
  %v856 = vunpack.c.l.b16 %v784
  %v857 = vunpack.c.l.b16 %v785
  %v858 = vunpack.c.l.b16 %v786
  %v859 = vunpack.c.l.b16 %v787
  %v860 = vunpack.c.l.b16 %v788
  %v861 = vunpack.c.l.b16 %v789
  %v862 = vpack.c.b16 %v827, %v826
  %v863 = vpack.c.b16 %v829, %v828
  %v864 = vpack.c.b16 %v831, %v830
  %v865 = vpack.c.b16 %v833, %v832
  %v866 = vpack.c.b16 %v835, %v834
  %v867 = vpack.c.b16 %v837, %v836
  %v868 = vpack.c.b16 %v839, %v838
  %v869 = vpack.c.b16 %v841, %v840
  %v870 = vpack.c.b16 %v843, %v842
  %v871 = vpack.c.b16 %v845, %v844
  %v872 = vpack.c.b16 %v847, %v846
  %v873 = vpack.c.b16 %v849, %v848
  %v874 = vpack.c.b16 %v851, %v850
  %v875 = vpack.c.b16 %v853, %v852
  %v876 = vpack.c.b16 %v855, %v854
  %v877 = vpack.c.b16 %v857, %v856
  %v878 = vpack.c.b16 %v859, %v858
  %v879 = vpack.c.b16 %v861, %v860
  %v881 = vsel %vm156, %v862, 0
  %v884 = vsel %vm156, %v863, 0
  %v887 = vsel %vm156, %v864, 0
  %v890 = vsel %vm156, %v865, 0
  %v893 = vsel %vm156, %v866, 0
  %v896 = vsel %vm156, %v867, 0
  %v899 = vsel %vm156, %v868, 0
  %v902 = vsel %vm156, %v869, 0
  %v905 = vsel %vm156, %v870, 0
  %v908 = vsel %vm156, %v871, 0
  %v911 = vsel %vm156, %v872, 0
  %v914 = vsel %vm156, %v873, 0
  %v917 = vsel %vm156, %v874, 0
  %v920 = vsel %vm156, %v875, 0
  %v923 = vsel %vm156, %v876, 0
  %v926 = vsel %vm156, %v877, 0
  %v929 = vsel %vm156, %v878, 0
  %v932 = vsel %vm156, %v879, 0
  %934 = vmatprep.subr.bf16.mxu0 0
  %935 = vmatpush1.bf16.msra.mxu0 %v153
  %936 = vmatprep.subr.bf16.mxu0 0
  %937 = vmatpush1.bf16.msra.mxu0 %v216
  %938 = vmatprep.subr.bf16.mxu0 0
  %939 = vmatpush1.bf16.msra.mxu0 0
  %940 = vmatprep.subr.bf16.mxu0 0
  %941 = vmatpush1.bf16.msra.mxu0 0
  %942 = vmatprep.subr.bf16.mxu0 0
  %943 = vmatpush1.bf16.msra.mxu0 0
  %944 = vmatprep.subr.bf16.mxu0 0
  %945 = vmatpush1.bf16.msra.mxu0 0
  %946 = vmatprep.subr.bf16.mxu0 0
  %947 = vmatpush1.bf16.msra.mxu0 0
  %948 = vmatprep.subr.bf16.mxu0 0
  %949 = vmatpush1.bf16.msra.mxu0 0
  %950 = vmatprep.subr.bf16.mxu0 0
  %951 = vmatpush1.bf16.msra.mxu0 0
  %952 = vmatprep.subr.bf16.mxu0 0
  %953 = vmatpush1.bf16.msra.mxu0 0
  %954 = vmatprep.subr.bf16.mxu0 0
  %955 = vmatpush1.bf16.msra.mxu0 0
  %956 = vmatprep.subr.bf16.mxu0 0
  %957 = vmatpush1.bf16.msra.mxu0 0
  %958 = vmatprep.subr.bf16.mxu0 0
  %959 = vmatpush1.bf16.msra.mxu0 0
  %960 = vmatprep.subr.bf16.mxu0 0
  %961 = vmatpush1.bf16.msra.mxu0 0
  %962 = vmatprep.subr.bf16.mxu0 0
  %963 = vmatpush1.bf16.msra.mxu0 0
  %964 = vmatprep.subr.bf16.mxu0 0
  %965 = vmatpush1.bf16.msra.mxu0 0
  %966 = vmatprep.mubr.bf16.mxu0 0
  %967 = vmatmul.mubr.bf16.gmra.mrb[0].mxu0 %v881
  %v968 = vpop.f32.mrb[0].mxu0
  %v969 = vadd.f32 0.0, %v968
  %v970 = vpop.f32.mrb[0].mxu0
  %v971 = vpop.f32.mrb[0].mxu0
  %v972 = vadd.f32 0.0, %v971
  %v973 = vpop.f32.mrb[0].mxu0
  %974 = vmatprep.mubr.bf16.mxu0 0
  %975 = vmatmul.mubr.bf16.gmra.mrb[0].mxu0 %v884
  %v976 = vpop.f32.mrb[0].mxu0
  %v977 = vadd.f32 0.0, %v976
  %v978 = vpop.f32.mrb[0].mxu0
  %v979 = vpop.f32.mrb[0].mxu0
  %v980 = vadd.f32 0.0, %v979
  %v981 = vpop.f32.mrb[0].mxu0
  %982 = vmatprep.mubr.bf16.mxu0 0
  %983 = vmatmul.mubr.bf16.gmra.mrb[0].mxu0 %v887
  %v984 = vpop.f32.mrb[0].mxu0
  %v985 = vadd.f32 0.0, %v984
  %v986 = vpop.f32.mrb[0].mxu0
  %v987 = vpop.f32.mrb[0].mxu0
  %v988 = vadd.f32 0.0, %v987
  %v989 = vpop.f32.mrb[0].mxu0
  %990 = vmatprep.mubr.bf16.mxu0 0
  %991 = vmatmul.mubr.bf16.gmra.mrb[0].mxu0 %v890
  %v992 = vpop.f32.mrb[0].mxu0
  %v993 = vadd.f32 0.0, %v992
  %v994 = vpop.f32.mrb[0].mxu0
  %v995 = vpop.f32.mrb[0].mxu0
  %v996 = vadd.f32 0.0, %v995
  %v997 = vpop.f32.mrb[0].mxu0
  %998 = vmatprep.mubr.bf16.mxu0 0
  %999 = vmatmul.mubr.bf16.gmra.mrb[0].mxu0 %v893
  %v1000 = vpop.f32.mrb[0].mxu0
  %v1001 = vadd.f32 0.0, %v1000
  %v1002 = vpop.f32.mrb[0].mxu0
  %v1003 = vpop.f32.mrb[0].mxu0
  %v1004 = vadd.f32 0.0, %v1003
  %v1005 = vpop.f32.mrb[0].mxu0
  %1006 = vmatprep.mubr.bf16.mxu0 0
  %1007 = vmatmul.mubr.bf16.gmra.mrb[0].mxu0 %v896
  %v1008 = vpop.f32.mrb[0].mxu0
  %v1009 = vadd.f32 0.0, %v1008
  %v1010 = vpop.f32.mrb[0].mxu0
  %v1011 = vpop.f32.mrb[0].mxu0
  %v1012 = vadd.f32 0.0, %v1011
  %v1013 = vpop.f32.mrb[0].mxu0
  %1014 = vmatprep.mubr.bf16.mxu0 0
  %1015 = vmatmul.mubr.bf16.gmra.mrb[0].mxu0 %v899
  %v1016 = vpop.f32.mrb[0].mxu0
  %v1017 = vadd.f32 0.0, %v1016
  %v1018 = vpop.f32.mrb[0].mxu0
  %v1019 = vpop.f32.mrb[0].mxu0
  %v1020 = vadd.f32 0.0, %v1019
  %v1021 = vpop.f32.mrb[0].mxu0
  %1022 = vmatprep.mubr.bf16.mxu0 0
  %1023 = vmatmul.mubr.bf16.gmra.mrb[0].mxu0 %v902
  %v1024 = vpop.f32.mrb[0].mxu0
  %v1025 = vadd.f32 0.0, %v1024
  %v1026 = vpop.f32.mrb[0].mxu0
  %v1027 = vpop.f32.mrb[0].mxu0
  %v1028 = vadd.f32 0.0, %v1027
  %v1029 = vpop.f32.mrb[0].mxu0
  %1030 = vmatprep.mubr.bf16.mxu0 0
  %1031 = vmatmul.mubr.bf16.gmra.mrb[0].mxu0 %v905
  %v1032 = vpop.f32.mrb[0].mxu0
  %v1033 = vadd.f32 0.0, %v1032
  %v1034 = vpop.f32.mrb[0].mxu0
  %v1035 = vpop.f32.mrb[0].mxu0
  %v1036 = vadd.f32 0.0, %v1035
  %v1037 = vpop.f32.mrb[0].mxu0
  %1038 = vmatprep.mubr.bf16.mxu0 0
  %1039 = vmatmul.mubr.bf16.gmra.mrb[0].mxu0 %v908
  %v1040 = vpop.f32.mrb[0].mxu0
  %v1041 = vadd.f32 0.0, %v1040
  %v1042 = vpop.f32.mrb[0].mxu0
  %v1043 = vpop.f32.mrb[0].mxu0
  %v1044 = vadd.f32 0.0, %v1043
  %v1045 = vpop.f32.mrb[0].mxu0
  %1046 = vmatprep.mubr.bf16.mxu0 0
  %1047 = vmatmul.mubr.bf16.gmra.mrb[0].mxu0 %v911
  %v1048 = vpop.f32.mrb[0].mxu0
  %v1049 = vadd.f32 0.0, %v1048
  %v1050 = vpop.f32.mrb[0].mxu0
  %v1051 = vpop.f32.mrb[0].mxu0
  %v1052 = vadd.f32 0.0, %v1051
  %v1053 = vpop.f32.mrb[0].mxu0
  %1054 = vmatprep.mubr.bf16.mxu0 0
  %1055 = vmatmul.mubr.bf16.gmra.mrb[0].mxu0 %v914
  %v1056 = vpop.f32.mrb[0].mxu0
  %v1057 = vadd.f32 0.0, %v1056
  %v1058 = vpop.f32.mrb[0].mxu0
  %v1059 = vpop.f32.mrb[0].mxu0
  %v1060 = vadd.f32 0.0, %v1059
  %v1061 = vpop.f32.mrb[0].mxu0
  %1062 = vmatprep.mubr.bf16.mxu0 0
  %1063 = vmatmul.mubr.bf16.gmra.mrb[0].mxu0 %v917
  %v1064 = vpop.f32.mrb[0].mxu0
  %v1065 = vadd.f32 0.0, %v1064
  %v1066 = vpop.f32.mrb[0].mxu0
  %v1067 = vpop.f32.mrb[0].mxu0
  %v1068 = vadd.f32 0.0, %v1067
  %v1069 = vpop.f32.mrb[0].mxu0
  %1070 = vmatprep.mubr.bf16.mxu0 0
  %1071 = vmatmul.mubr.bf16.gmra.mrb[0].mxu0 %v920
  %v1072 = vpop.f32.mrb[0].mxu0
  %v1073 = vadd.f32 0.0, %v1072
  %v1074 = vpop.f32.mrb[0].mxu0
  %v1075 = vpop.f32.mrb[0].mxu0
  %v1076 = vadd.f32 0.0, %v1075
  %v1077 = vpop.f32.mrb[0].mxu0
  %1078 = vmatprep.mubr.bf16.mxu0 0
  %1079 = vmatmul.mubr.bf16.gmra.mrb[0].mxu0 %v923
  %v1080 = vpop.f32.mrb[0].mxu0
  %v1081 = vadd.f32 0.0, %v1080
  %v1082 = vpop.f32.mrb[0].mxu0
  %v1083 = vpop.f32.mrb[0].mxu0
  %v1084 = vadd.f32 0.0, %v1083
  %v1085 = vpop.f32.mrb[0].mxu0
  %1086 = vmatprep.mubr.bf16.mxu0 0
  %1087 = vmatmul.mubr.bf16.gmra.mrb[0].mxu0 %v926
  %v1088 = vpop.f32.mrb[0].mxu0
  %v1089 = vadd.f32 0.0, %v1088
  %v1090 = vpop.f32.mrb[0].mxu0
  %v1091 = vpop.f32.mrb[0].mxu0
  %v1092 = vadd.f32 0.0, %v1091
  %v1093 = vpop.f32.mrb[0].mxu0
  %1094 = vmatprep.mubr.bf16.mxu0 0
  %1095 = vmatmul.mubr.bf16.gmra.mrb[0].mxu0 %v929
  %v1096 = vpop.f32.mrb[0].mxu0
  %v1097 = vadd.f32 0.0, %v1096
  %v1098 = vpop.f32.mrb[0].mxu0
  %v1099 = vpop.f32.mrb[0].mxu0
  %v1100 = vadd.f32 0.0, %v1099
  %v1101 = vpop.f32.mrb[0].mxu0
  %1102 = vmatprep.mubr.bf16.mxu0 0
  %1103 = vmatmul.mubr.bf16.gmra.mrb[0].mxu0 %v932
  %v1104 = vpop.f32.mrb[0].mxu0
  %v1105 = vadd.f32 0.0, %v1104
  %v1106 = vpop.f32.mrb[0].mxu0
  %v1107 = vpop.f32.mrb[0].mxu0
  %v1108 = vadd.f32 0.0, %v1107
  %v1109 = vpop.f32.mrb[0].mxu0
  %1110 = vdwg.mxu0
  %s1111 = scalar_lea.vmem %s0, 432
  %v1112 = vld [vmem:[%s1111] sm:$0xf]
  %v1113 = vld [vmem:[%s1111 + $0x4] sm:$0xf]
  %v1114 = vld [vmem:[%s1111 + $0x8] sm:$0xf]
  %v1115 = vld [vmem:[%s1111 + $0xc] sm:$0xf]
  %v1116 = vld [vmem:[%s1111 + $0x10] sm:$0xf]
  %v1117 = vld [vmem:[%s1111 + $0x14] sm:$0xf]
  %v1118 = vld [vmem:[%s1111 + $0x18] sm:$0xf]
  %v1119 = vld [vmem:[%s1111 + $0x1c] sm:$0xf]
  %v1120 = vld [vmem:[%s1111 + $0x20] sm:$0xf]
  %v1121 = vld [vmem:[%s1111 + $0x24] sm:$0xf]
  %v1122 = vld [vmem:[%s1111 + $0x28] sm:$0xf]
  %v1123 = vld [vmem:[%s1111 + $0x2c] sm:$0xf]
  %v1124 = vld [vmem:[%s1111 + $0x30] sm:$0xf]
  %v1125 = vld [vmem:[%s1111 + $0x34] sm:$0xf]
  %v1126 = vld [vmem:[%s1111 + $0x38] sm:$0xf]
  %v1127 = vld [vmem:[%s1111 + $0x3c] sm:$0xf]
  %v1128 = vld [vmem:[%s1111 + $0x40] sm:$0xf]
  %v1129 = vld [vmem:[%s1111 + $0x44] sm:$0xf]
  %v1130 = vld [vmem:[%s1111 + $0x48] sm:$0xf]
  %v1131 = vld [vmem:[%s1111 + $0x4c] sm:$0xf]
  %v1132 = vld [vmem:[%s1111 + $0x50] sm:$0xf]
  %v1133 = vld [vmem:[%s1111 + $0x54] sm:$0xf]
  %v1134 = vld [vmem:[%s1111 + $0x58] sm:$0xf]
  %v1135 = vld [vmem:[%s1111 + $0x5c] sm:$0xf]
  %v1136 = vld [vmem:[%s1111 + $0x60] sm:$0xf]
  %v1137 = vld [vmem:[%s1111 + $0x64] sm:$0xf]
  %v1138 = vld [vmem:[%s1111 + $0x68] sm:$0xf]
  %v1139 = vld [vmem:[%s1111 + $0x6c] sm:$0xf]
  %v1140 = vld [vmem:[%s1111 + $0x70] sm:$0xf]
  %v1141 = vld [vmem:[%s1111 + $0x74] sm:$0xf]
  %v1142 = vld [vmem:[%s1111 + $0x78] sm:$0xf]
  %v1143 = vld [vmem:[%s1111 + $0x7c] sm:$0xf]
  %v1144 = vld [vmem:[%s1111 + $0x80] sm:$0xf]
  %v1145 = vld [vmem:[%s1111 + $0x84] sm:$0xf]
  %v1146 = vld [vmem:[%s1111 + $0x88] sm:$0xf]
  %v1147 = vld [vmem:[%s1111 + $0x8c] sm:$0xf]
  %v1184 = vunpack.c.l.b16 %v1112
  %v1185 = vunpack.c.l.b16 %v1113
  %v1186 = vunpack.c.l.b16 %v1114
  %v1187 = vunpack.c.l.b16 %v1115
  %v1188 = vunpack.c.l.b16 %v1116
  %v1189 = vunpack.c.l.b16 %v1117
  %v1190 = vunpack.c.l.b16 %v1118
  %v1191 = vunpack.c.l.b16 %v1119
  %v1192 = vunpack.c.l.b16 %v1120
  %v1193 = vunpack.c.l.b16 %v1121
  %v1194 = vunpack.c.l.b16 %v1122
  %v1195 = vunpack.c.l.b16 %v1123
  %v1196 = vunpack.c.l.b16 %v1124
  %v1197 = vunpack.c.l.b16 %v1125
  %v1198 = vunpack.c.l.b16 %v1126
  %v1199 = vunpack.c.l.b16 %v1127
  %v1200 = vunpack.c.l.b16 %v1128
  %v1201 = vunpack.c.l.b16 %v1129
  %v1202 = vunpack.c.l.b16 %v1130
  %v1203 = vunpack.c.l.b16 %v1131
  %v1204 = vunpack.c.l.b16 %v1132
  %v1205 = vunpack.c.l.b16 %v1133
  %v1206 = vunpack.c.l.b16 %v1134
  %v1207 = vunpack.c.l.b16 %v1135
  %v1208 = vunpack.c.l.b16 %v1136
  %v1209 = vunpack.c.l.b16 %v1137
  %v1210 = vunpack.c.l.b16 %v1138
  %v1211 = vunpack.c.l.b16 %v1139
  %v1212 = vunpack.c.l.b16 %v1140
  %v1213 = vunpack.c.l.b16 %v1141
  %v1214 = vunpack.c.l.b16 %v1142
  %v1215 = vunpack.c.l.b16 %v1143
  %v1216 = vunpack.c.l.b16 %v1144
  %v1217 = vunpack.c.l.b16 %v1145
  %v1218 = vunpack.c.l.b16 %v1146
  %v1219 = vunpack.c.l.b16 %v1147
  %v1220 = vpack.c.b16 %v1185, %v1184
  %v1221 = vpack.c.b16 %v1187, %v1186
  %v1222 = vpack.c.b16 %v1189, %v1188
  %v1223 = vpack.c.b16 %v1191, %v1190
  %v1224 = vpack.c.b16 %v1193, %v1192
  %v1225 = vpack.c.b16 %v1195, %v1194
  %v1226 = vpack.c.b16 %v1197, %v1196
  %v1227 = vpack.c.b16 %v1199, %v1198
  %v1228 = vpack.c.b16 %v1201, %v1200
  %v1229 = vpack.c.b16 %v1203, %v1202
  %v1230 = vpack.c.b16 %v1205, %v1204
  %v1231 = vpack.c.b16 %v1207, %v1206
  %v1232 = vpack.c.b16 %v1209, %v1208
  %v1233 = vpack.c.b16 %v1211, %v1210
  %v1234 = vpack.c.b16 %v1213, %v1212
  %v1235 = vpack.c.b16 %v1215, %v1214
  %v1236 = vpack.c.b16 %v1217, %v1216
  %v1237 = vpack.c.b16 %v1219, %v1218
  %v1239 = vsel %vm156, %v1220, 0
  %v1242 = vsel %vm156, %v1221, 0
  %v1245 = vsel %vm156, %v1222, 0
  %v1248 = vsel %vm156, %v1223, 0
  %v1251 = vsel %vm156, %v1224, 0
  %v1254 = vsel %vm156, %v1225, 0
  %v1257 = vsel %vm156, %v1226, 0
  %v1260 = vsel %vm156, %v1227, 0
  %v1263 = vsel %vm156, %v1228, 0
  %v1266 = vsel %vm156, %v1229, 0
  %v1269 = vsel %vm156, %v1230, 0
  %v1272 = vsel %vm156, %v1231, 0
  %v1275 = vsel %vm156, %v1232, 0
  %v1278 = vsel %vm156, %v1233, 0
  %v1281 = vsel %vm156, %v1234, 0
  %v1284 = vsel %vm156, %v1235, 0
  %v1287 = vsel %vm156, %v1236, 0
  %v1290 = vsel %vm156, %v1237, 0
  %1292 = vmatprep.subr.bf16.mxu0 0
  %1293 = vmatpush1.bf16.msra.mxu0 %v153
  %1294 = vmatprep.subr.bf16.mxu0 0
  %1295 = vmatpush1.bf16.msra.mxu0 %v216
  %1296 = vmatprep.subr.bf16.mxu0 0
  %1297 = vmatpush1.bf16.msra.mxu0 0
  %1298 = vmatprep.subr.bf16.mxu0 0
  %1299 = vmatpush1.bf16.msra.mxu0 0
  %1300 = vmatprep.subr.bf16.mxu0 0
  %1301 = vmatpush1.bf16.msra.mxu0 0
  %1302 = vmatprep.subr.bf16.mxu0 0
  %1303 = vmatpush1.bf16.msra.mxu0 0
  %1304 = vmatprep.subr.bf16.mxu0 0
  %1305 = vmatpush1.bf16.msra.mxu0 0
  %1306 = vmatprep.subr.bf16.mxu0 0
  %1307 = vmatpush1.bf16.msra.mxu0 0
  %1308 = vmatprep.subr.bf16.mxu0 0
  %1309 = vmatpush1.bf16.msra.mxu0 0
  %1310 = vmatprep.subr.bf16.mxu0 0
  %1311 = vmatpush1.bf16.msra.mxu0 0
  %1312 = vmatprep.subr.bf16.mxu0 0
  %1313 = vmatpush1.bf16.msra.mxu0 0
  %1314 = vmatprep.subr.bf16.mxu0 0
  %1315 = vmatpush1.bf16.msra.mxu0 0
  %1316 = vmatprep.subr.bf16.mxu0 0
  %1317 = vmatpush1.bf16.msra.mxu0 0
  %1318 = vmatprep.subr.bf16.mxu0 0
  %1319 = vmatpush1.bf16.msra.mxu0 0
  %1320 = vmatprep.subr.bf16.mxu0 0
  %1321 = vmatpush1.bf16.msra.mxu0 0
  %1322 = vmatprep.subr.bf16.mxu0 0
  %1323 = vmatpush1.bf16.msra.mxu0 0
  %1324 = vmatprep.mubr.bf16.mxu0 0
  %1325 = vmatmul.mubr.bf16.gmra.mrb[0].mxu0 %v1239
  %v1326 = vpop.f32.mrb[0].mxu0
  %v1327 = vadd.f32 0.0, %v1326
  %v1328 = vpop.f32.mrb[0].mxu0
  %v1329 = vpop.f32.mrb[0].mxu0
  %v1330 = vadd.f32 0.0, %v1329
  %v1331 = vpop.f32.mrb[0].mxu0
  %1332 = vmatprep.mubr.bf16.mxu0 0
  %1333 = vmatmul.mubr.bf16.gmra.mrb[0].mxu0 %v1242
  %v1334 = vpop.f32.mrb[0].mxu0
  %v1335 = vadd.f32 0.0, %v1334
  %v1336 = vpop.f32.mrb[0].mxu0
  %v1337 = vpop.f32.mrb[0].mxu0
  %v1338 = vadd.f32 0.0, %v1337
  %v1339 = vpop.f32.mrb[0].mxu0
  %1340 = vmatprep.mubr.bf16.mxu0 0
  %1341 = vmatmul.mubr.bf16.gmra.mrb[0].mxu0 %v1245
  %v1342 = vpop.f32.mrb[0].mxu0
  %v1343 = vadd.f32 0.0, %v1342
  %v1344 = vpop.f32.mrb[0].mxu0
  %v1345 = vpop.f32.mrb[0].mxu0
  %v1346 = vadd.f32 0.0, %v1345
  %v1347 = vpop.f32.mrb[0].mxu0
  %1348 = vmatprep.mubr.bf16.mxu0 0
  %1349 = vmatmul.mubr.bf16.gmra.mrb[0].mxu0 %v1248
  %v1350 = vpop.f32.mrb[0].mxu0
  %v1351 = vadd.f32 0.0, %v1350
  %v1352 = vpop.f32.mrb[0].mxu0
  %v1353 = vpop.f32.mrb[0].mxu0
  %v1354 = vadd.f32 0.0, %v1353
  %v1355 = vpop.f32.mrb[0].mxu0
  %1356 = vmatprep.mubr.bf16.mxu0 0
  %1357 = vmatmul.mubr.bf16.gmra.mrb[0].mxu0 %v1251
  %v1358 = vpop.f32.mrb[0].mxu0
  %v1359 = vadd.f32 0.0, %v1358
  %v1360 = vpop.f32.mrb[0].mxu0
  %v1361 = vpop.f32.mrb[0].mxu0
  %v1362 = vadd.f32 0.0, %v1361
  %v1363 = vpop.f32.mrb[0].mxu0
  %1364 = vmatprep.mubr.bf16.mxu0 0
  %1365 = vmatmul.mubr.bf16.gmra.mrb[0].mxu0 %v1254
  %v1366 = vpop.f32.mrb[0].mxu0
  %v1367 = vadd.f32 0.0, %v1366
  %v1368 = vpop.f32.mrb[0].mxu0
  %v1369 = vpop.f32.mrb[0].mxu0
  %v1370 = vadd.f32 0.0, %v1369
  %v1371 = vpop.f32.mrb[0].mxu0
  %1372 = vmatprep.mubr.bf16.mxu0 0
  %1373 = vmatmul.mubr.bf16.gmra.mrb[0].mxu0 %v1257
  %v1374 = vpop.f32.mrb[0].mxu0
  %v1375 = vadd.f32 0.0, %v1374
  %v1376 = vpop.f32.mrb[0].mxu0
  %v1377 = vpop.f32.mrb[0].mxu0
  %v1378 = vadd.f32 0.0, %v1377
  %v1379 = vpop.f32.mrb[0].mxu0
  %1380 = vmatprep.mubr.bf16.mxu0 0
  %1381 = vmatmul.mubr.bf16.gmra.mrb[0].mxu0 %v1260
  %v1382 = vpop.f32.mrb[0].mxu0
  %v1383 = vadd.f32 0.0, %v1382
  %v1384 = vpop.f32.mrb[0].mxu0
  %v1385 = vpop.f32.mrb[0].mxu0
  %v1386 = vadd.f32 0.0, %v1385
  %v1387 = vpop.f32.mrb[0].mxu0
  %1388 = vmatprep.mubr.bf16.mxu0 0
  %1389 = vmatmul.mubr.bf16.gmra.mrb[0].mxu0 %v1263
  %v1390 = vpop.f32.mrb[0].mxu0
  %v1391 = vadd.f32 0.0, %v1390
  %v1392 = vpop.f32.mrb[0].mxu0
  %v1393 = vpop.f32.mrb[0].mxu0
  %v1394 = vadd.f32 0.0, %v1393
  %v1395 = vpop.f32.mrb[0].mxu0
  %1396 = vmatprep.mubr.bf16.mxu0 0
  %1397 = vmatmul.mubr.bf16.gmra.mrb[0].mxu0 %v1266
  %v1398 = vpop.f32.mrb[0].mxu0
  %v1399 = vadd.f32 0.0, %v1398
  %v1400 = vpop.f32.mrb[0].mxu0
  %v1401 = vpop.f32.mrb[0].mxu0
  %v1402 = vadd.f32 0.0, %v1401
  %v1403 = vpop.f32.mrb[0].mxu0
  %1404 = vmatprep.mubr.bf16.mxu0 0
  %1405 = vmatmul.mubr.bf16.gmra.mrb[0].mxu0 %v1269
  %v1406 = vpop.f32.mrb[0].mxu0
  %v1407 = vadd.f32 0.0, %v1406
  %v1408 = vpop.f32.mrb[0].mxu0
  %v1409 = vpop.f32.mrb[0].mxu0
  %v1410 = vadd.f32 0.0, %v1409
  %v1411 = vpop.f32.mrb[0].mxu0
  %1412 = vmatprep.mubr.bf16.mxu0 0
  %1413 = vmatmul.mubr.bf16.gmra.mrb[0].mxu0 %v1272
  %v1414 = vpop.f32.mrb[0].mxu0
  %v1415 = vadd.f32 0.0, %v1414
  %v1416 = vpop.f32.mrb[0].mxu0
  %v1417 = vpop.f32.mrb[0].mxu0
  %v1418 = vadd.f32 0.0, %v1417
  %v1419 = vpop.f32.mrb[0].mxu0
  %1420 = vmatprep.mubr.bf16.mxu0 0
  %1421 = vmatmul.mubr.bf16.gmra.mrb[0].mxu0 %v1275
  %v1422 = vpop.f32.mrb[0].mxu0
  %v1423 = vadd.f32 0.0, %v1422
  %v1424 = vpop.f32.mrb[0].mxu0
  %v1425 = vpop.f32.mrb[0].mxu0
  %v1426 = vadd.f32 0.0, %v1425
  %v1427 = vpop.f32.mrb[0].mxu0
  %1428 = vmatprep.mubr.bf16.mxu0 0
  %1429 = vmatmul.mubr.bf16.gmra.mrb[0].mxu0 %v1278
  %v1430 = vpop.f32.mrb[0].mxu0
  %v1431 = vadd.f32 0.0, %v1430
  %v1432 = vpop.f32.mrb[0].mxu0
  %v1433 = vpop.f32.mrb[0].mxu0
  %v1434 = vadd.f32 0.0, %v1433
  %v1435 = vpop.f32.mrb[0].mxu0
  %1436 = vmatprep.mubr.bf16.mxu0 0
  %1437 = vmatmul.mubr.bf16.gmra.mrb[0].mxu0 %v1281
  %v1438 = vpop.f32.mrb[0].mxu0
  %v1439 = vadd.f32 0.0, %v1438
  %v1440 = vpop.f32.mrb[0].mxu0
  %v1441 = vpop.f32.mrb[0].mxu0
  %v1442 = vadd.f32 0.0, %v1441
  %v1443 = vpop.f32.mrb[0].mxu0
  %1444 = vmatprep.mubr.bf16.mxu0 0
  %1445 = vmatmul.mubr.bf16.gmra.mrb[0].mxu0 %v1284
  %v1446 = vpop.f32.mrb[0].mxu0
  %v1447 = vadd.f32 0.0, %v1446
  %v1448 = vpop.f32.mrb[0].mxu0
  %v1449 = vpop.f32.mrb[0].mxu0
  %v1450 = vadd.f32 0.0, %v1449
  %v1451 = vpop.f32.mrb[0].mxu0
  %1452 = vmatprep.mubr.bf16.mxu0 0
  %1453 = vmatmul.mubr.bf16.gmra.mrb[0].mxu0 %v1287
  %v1454 = vpop.f32.mrb[0].mxu0
  %v1455 = vadd.f32 0.0, %v1454
  %v1456 = vpop.f32.mrb[0].mxu0
  %v1457 = vpop.f32.mrb[0].mxu0
  %v1458 = vadd.f32 0.0, %v1457
  %v1459 = vpop.f32.mrb[0].mxu0
  %1460 = vmatprep.mubr.bf16.mxu0 0
  %1461 = vmatmul.mubr.bf16.gmra.mrb[0].mxu0 %v1290
  %v1462 = vpop.f32.mrb[0].mxu0
  %v1463 = vadd.f32 0.0, %v1462
  %v1464 = vpop.f32.mrb[0].mxu0
  %v1465 = vpop.f32.mrb[0].mxu0
  %v1466 = vadd.f32 0.0, %v1465
  %v1467 = vpop.f32.mrb[0].mxu0
  %1468 = vdwg.mxu0
  %v1469 = vmax.f32 %v253, %v611
  %v1470 = vmax.f32 %v256, %v614
  %v1471 = vmax.f32 %v261, %v619
  %v1472 = vmax.f32 %v264, %v622
  %v1473 = vmax.f32 %v269, %v627
  %v1474 = vmax.f32 %v272, %v630
  %v1475 = vmax.f32 %v277, %v635
  %v1476 = vmax.f32 %v280, %v638
  %v1477 = vmax.f32 %v285, %v643
  %v1478 = vmax.f32 %v288, %v646
  %v1479 = vmax.f32 %v293, %v651
  %v1480 = vmax.f32 %v296, %v654
  %v1481 = vmax.f32 %v301, %v659
  %v1482 = vmax.f32 %v304, %v662
  %v1483 = vmax.f32 %v309, %v667
  %v1484 = vmax.f32 %v312, %v670
  %v1485 = vmax.f32 %v317, %v675
  %v1486 = vmax.f32 %v320, %v678
  %v1487 = vmax.f32 %v325, %v683
  %v1488 = vmax.f32 %v328, %v686
  %v1489 = vmax.f32 %v333, %v691
  %v1490 = vmax.f32 %v336, %v694
  %v1491 = vmax.f32 %v341, %v699
  %v1492 = vmax.f32 %v344, %v702
  %v1493 = vmax.f32 %v349, %v707
  %v1494 = vmax.f32 %v352, %v710
  %v1495 = vmax.f32 %v357, %v715
  %v1496 = vmax.f32 %v360, %v718
  %v1497 = vmax.f32 %v365, %v723
  %v1498 = vmax.f32 %v368, %v726
  %v1499 = vmax.f32 %v373, %v731
  %v1500 = vmax.f32 %v376, %v734
  %v1501 = vmax.f32 %v381, %v739
  %v1502 = vmax.f32 %v384, %v742
  %v1503 = vmax.f32 %v389, %v747
  %v1504 = vmax.f32 %v392, %v750
  %v1505 = vmax.f32 %v969, %v1327
  %v1506 = vmax.f32 %v972, %v1330
  %v1507 = vmax.f32 %v977, %v1335
  %v1508 = vmax.f32 %v980, %v1338
  %v1509 = vmax.f32 %v985, %v1343
  %v1510 = vmax.f32 %v988, %v1346
  %v1511 = vmax.f32 %v993, %v1351
  %v1512 = vmax.f32 %v996, %v1354
  %v1513 = vmax.f32 %v1001, %v1359
  %v1514 = vmax.f32 %v1004, %v1362
  %v1515 = vmax.f32 %v1009, %v1367
  %v1516 = vmax.f32 %v1012, %v1370
  %v1517 = vmax.f32 %v1017, %v1375
  %v1518 = vmax.f32 %v1020, %v1378
  %v1519 = vmax.f32 %v1025, %v1383
  %v1520 = vmax.f32 %v1028, %v1386
  %v1521 = vmax.f32 %v1033, %v1391
  %v1522 = vmax.f32 %v1036, %v1394
  %v1523 = vmax.f32 %v1041, %v1399
  %v1524 = vmax.f32 %v1044, %v1402
  %v1525 = vmax.f32 %v1049, %v1407
  %v1526 = vmax.f32 %v1052, %v1410
  %v1527 = vmax.f32 %v1057, %v1415
  %v1528 = vmax.f32 %v1060, %v1418
  %v1529 = vmax.f32 %v1065, %v1423
  %v1530 = vmax.f32 %v1068, %v1426
  %v1531 = vmax.f32 %v1073, %v1431
  %v1532 = vmax.f32 %v1076, %v1434
  %v1533 = vmax.f32 %v1081, %v1439
  %v1534 = vmax.f32 %v1084, %v1442
  %v1535 = vmax.f32 %v1089, %v1447
  %v1536 = vmax.f32 %v1092, %v1450
  %v1537 = vmax.f32 %v1097, %v1455
  %v1538 = vmax.f32 %v1100, %v1458
  %v1539 = vmax.f32 %v1105, %v1463
  %v1540 = vmax.f32 %v1108, %v1466
  %v1541 = vmax.f32 %v1469, %v1505
  %v1542 = vmax.f32 %v1470, %v1506
  %v1543 = vmax.f32 %v1471, %v1507
  %v1544 = vmax.f32 %v1472, %v1508
  %v1545 = vmax.f32 %v1473, %v1509
  %v1546 = vmax.f32 %v1474, %v1510
  %v1547 = vmax.f32 %v1475, %v1511
  %v1548 = vmax.f32 %v1476, %v1512
  %v1549 = vmax.f32 %v1477, %v1513
  %v1550 = vmax.f32 %v1478, %v1514
  %v1551 = vmax.f32 %v1479, %v1515
  %v1552 = vmax.f32 %v1480, %v1516
  %v1553 = vmax.f32 %v1481, %v1517
  %v1554 = vmax.f32 %v1482, %v1518
  %v1555 = vmax.f32 %v1483, %v1519
  %v1556 = vmax.f32 %v1484, %v1520
  %v1557 = vmax.f32 %v1485, %v1521
  %v1558 = vmax.f32 %v1486, %v1522
  %v1559 = vmax.f32 %v1487, %v1523
  %v1560 = vmax.f32 %v1488, %v1524
  %v1561 = vmax.f32 %v1489, %v1525
  %v1562 = vmax.f32 %v1490, %v1526
  %v1563 = vmax.f32 %v1491, %v1527
  %v1564 = vmax.f32 %v1492, %v1528
  %v1565 = vmax.f32 %v1493, %v1529
  %v1566 = vmax.f32 %v1494, %v1530
  %v1567 = vmax.f32 %v1495, %v1531
  %v1568 = vmax.f32 %v1496, %v1532
  %v1569 = vmax.f32 %v1497, %v1533
  %v1570 = vmax.f32 %v1498, %v1534
  %v1571 = vmax.f32 %v1499, %v1535
  %v1572 = vmax.f32 %v1500, %v1536
  %v1573 = vmax.f32 %v1501, %v1537
  %v1574 = vmax.f32 %v1502, %v1538
  %v1575 = vmax.f32 %v1503, %v1539
  %v1576 = vmax.f32 %v1504, %v1540
  %v1577 = vld [vmem:[%s2] sm:$0x1]
  %v1579 = vlaneseq
  %v1580 = vshrl.u32 %v1579, 7
  %v1581 = vsub.s32 0, %v1580
  %v1582 = vrot.slane %v1577, %v1581
  %v1584 = vadd.f32 %v1541, %v1582
  %v1585 = vadd.f32 %v1542, %v1582
  %v1586 = vadd.f32 %v1543, %v1582
  %v1587 = vadd.f32 %v1544, %v1582
  %v1588 = vadd.f32 %v1545, %v1582
  %v1589 = vadd.f32 %v1546, %v1582
  %v1590 = vadd.f32 %v1547, %v1582
  %v1591 = vadd.f32 %v1548, %v1582
  %v1592 = vadd.f32 %v1549, %v1582
  %v1593 = vadd.f32 %v1550, %v1582
  %v1594 = vadd.f32 %v1551, %v1582
  %v1595 = vadd.f32 %v1552, %v1582
  %v1596 = vadd.f32 %v1553, %v1582
  %v1597 = vadd.f32 %v1554, %v1582
  %v1598 = vadd.f32 %v1555, %v1582
  %v1599 = vadd.f32 %v1556, %v1582
  %v1600 = vadd.f32 %v1557, %v1582
  %v1601 = vadd.f32 %v1558, %v1582
  %v1602 = vadd.f32 %v1559, %v1582
  %v1603 = vadd.f32 %v1560, %v1582
  %v1604 = vadd.f32 %v1561, %v1582
  %v1605 = vadd.f32 %v1562, %v1582
  %v1606 = vadd.f32 %v1563, %v1582
  %v1607 = vadd.f32 %v1564, %v1582
  %v1608 = vadd.f32 %v1565, %v1582
  %v1609 = vadd.f32 %v1566, %v1582
  %v1610 = vadd.f32 %v1567, %v1582
  %v1611 = vadd.f32 %v1568, %v1582
  %v1612 = vadd.f32 %v1569, %v1582
  %v1613 = vadd.f32 %v1570, %v1582
  %v1614 = vadd.f32 %v1571, %v1582
  %v1615 = vadd.f32 %v1572, %v1582
  %v1616 = vadd.f32 %v1573, %v1582
  %v1617 = vadd.f32 %v1574, %v1582
  %v1618 = vadd.f32 %v1575, %v1582
  %v1619 = vadd.f32 %v1576, %v1582
  %v1620 = vmax.f32 %v1584, 0.0
  %v1621 = vmax.f32 %v1585, 0.0
  %v1622 = vmax.f32 %v1586, 0.0
  %v1623 = vmax.f32 %v1587, 0.0
  %v1624 = vmax.f32 %v1588, 0.0
  %v1625 = vmax.f32 %v1589, 0.0
  %v1626 = vmax.f32 %v1590, 0.0
  %v1627 = vmax.f32 %v1591, 0.0
  %v1628 = vmax.f32 %v1592, 0.0
  %v1629 = vmax.f32 %v1593, 0.0
  %v1630 = vmax.f32 %v1594, 0.0
  %v1631 = vmax.f32 %v1595, 0.0
  %v1632 = vmax.f32 %v1596, 0.0
  %v1633 = vmax.f32 %v1597, 0.0
  %v1634 = vmax.f32 %v1598, 0.0
  %v1635 = vmax.f32 %v1599, 0.0
  %v1636 = vmax.f32 %v1600, 0.0
  %v1637 = vmax.f32 %v1601, 0.0
  %v1638 = vmax.f32 %v1602, 0.0
  %v1639 = vmax.f32 %v1603, 0.0
  %v1640 = vmax.f32 %v1604, 0.0
  %v1641 = vmax.f32 %v1605, 0.0
  %v1642 = vmax.f32 %v1606, 0.0
  %v1643 = vmax.f32 %v1607, 0.0
  %v1644 = vmax.f32 %v1608, 0.0
  %v1645 = vmax.f32 %v1609, 0.0
  %v1646 = vmax.f32 %v1610, 0.0
  %v1647 = vmax.f32 %v1611, 0.0
  %v1648 = vmax.f32 %v1612, 0.0
  %v1649 = vmax.f32 %v1613, 0.0
  %v1650 = vmax.f32 %v1614, 0.0
  %v1651 = vmax.f32 %v1615, 0.0
  %v1652 = vmax.f32 %v1616, 0.0
  %v1653 = vmax.f32 %v1617, 0.0
  %v1654 = vmax.f32 %v1618, 0.0
  %v1655 = vmax.f32 %v1619, 0.0
  %v1656 = vpack.c.bf16 %v1621, %v1620
  %v1657 = vpack.c.bf16 %v1623, %v1622
  %v1658 = vpack.c.bf16 %v1625, %v1624
  %v1659 = vpack.c.bf16 %v1627, %v1626
  %v1660 = vpack.c.bf16 %v1629, %v1628
  %v1661 = vpack.c.bf16 %v1631, %v1630
  %v1662 = vpack.c.bf16 %v1633, %v1632
  %v1663 = vpack.c.bf16 %v1635, %v1634
  %v1664 = vpack.c.bf16 %v1637, %v1636
  %v1665 = vpack.c.bf16 %v1639, %v1638
  %v1666 = vpack.c.bf16 %v1641, %v1640
  %v1667 = vpack.c.bf16 %v1643, %v1642
  %v1668 = vpack.c.bf16 %v1645, %v1644
  %v1669 = vpack.c.bf16 %v1647, %v1646
  %v1670 = vpack.c.bf16 %v1649, %v1648
  %v1671 = vpack.c.bf16 %v1651, %v1650
  %v1672 = vpack.c.bf16 %v1653, %v1652
  %v1673 = vpack.c.bf16 %v1655, %v1654
  %v1692 = vunpack.c.l.b16 %v1656
  %v1693 = vunpack.c.h.b16 %v1656
  %v1694 = vunpack.c.l.b16 %v1657
  %v1695 = vunpack.c.h.b16 %v1657
  %v1696 = vunpack.c.l.b16 %v1658
  %v1697 = vunpack.c.h.b16 %v1658
  %v1698 = vunpack.c.l.b16 %v1659
  %v1699 = vunpack.c.h.b16 %v1659
  %v1700 = vunpack.c.l.b16 %v1660
  %v1701 = vunpack.c.h.b16 %v1660
  %v1702 = vunpack.c.l.b16 %v1661
  %v1703 = vunpack.c.h.b16 %v1661
  %v1704 = vunpack.c.l.b16 %v1662
  %v1705 = vunpack.c.h.b16 %v1662
  %v1706 = vunpack.c.l.b16 %v1663
  %v1707 = vunpack.c.h.b16 %v1663
  %v1708 = vunpack.c.l.b16 %v1664
  %v1709 = vunpack.c.h.b16 %v1664
  %v1710 = vunpack.c.l.b16 %v1665
  %v1711 = vunpack.c.h.b16 %v1665
  %v1712 = vunpack.c.l.b16 %v1666
  %v1713 = vunpack.c.h.b16 %v1666
  %v1714 = vunpack.c.l.b16 %v1667
  %v1715 = vunpack.c.h.b16 %v1667
  %v1716 = vunpack.c.l.b16 %v1668
  %v1717 = vunpack.c.h.b16 %v1668
  %v1718 = vunpack.c.l.b16 %v1669
  %v1719 = vunpack.c.h.b16 %v1669
  %v1720 = vunpack.c.l.b16 %v1670
  %v1721 = vunpack.c.h.b16 %v1670
  %v1722 = vunpack.c.l.b16 %v1671
  %v1723 = vunpack.c.h.b16 %v1671
  %v1724 = vunpack.c.l.b16 %v1672
  %v1725 = vunpack.c.h.b16 %v1672
  %v1726 = vunpack.c.l.b16 %v1673
  %v1727 = vunpack.c.h.b16 %v1673
  %v1728 = vpack.c.b16 %v1692, %v1692
  %v1729 = vpack.c.b16 %v1693, %v1693
  %v1730 = vpack.c.b16 %v1694, %v1694
  %v1731 = vpack.c.b16 %v1695, %v1695
  %v1732 = vpack.c.b16 %v1696, %v1696
  %v1733 = vpack.c.b16 %v1697, %v1697
  %v1734 = vpack.c.b16 %v1698, %v1698
  %v1735 = vpack.c.b16 %v1699, %v1699
  %v1736 = vpack.c.b16 %v1700, %v1700
  %v1737 = vpack.c.b16 %v1701, %v1701
  %v1738 = vpack.c.b16 %v1702, %v1702
  %v1739 = vpack.c.b16 %v1703, %v1703
  %v1740 = vpack.c.b16 %v1704, %v1704
  %v1741 = vpack.c.b16 %v1705, %v1705
  %v1742 = vpack.c.b16 %v1706, %v1706
  %v1743 = vpack.c.b16 %v1707, %v1707
  %v1744 = vpack.c.b16 %v1708, %v1708
  %v1745 = vpack.c.b16 %v1709, %v1709
  %v1746 = vpack.c.b16 %v1710, %v1710
  %v1747 = vpack.c.b16 %v1711, %v1711
  %v1748 = vpack.c.b16 %v1712, %v1712
  %v1749 = vpack.c.b16 %v1713, %v1713
  %v1750 = vpack.c.b16 %v1714, %v1714
  %v1751 = vpack.c.b16 %v1715, %v1715
  %v1752 = vpack.c.b16 %v1716, %v1716
  %v1753 = vpack.c.b16 %v1717, %v1717
  %v1754 = vpack.c.b16 %v1718, %v1718
  %v1755 = vpack.c.b16 %v1719, %v1719
  %v1756 = vpack.c.b16 %v1720, %v1720
  %v1757 = vpack.c.b16 %v1721, %v1721
  %v1758 = vpack.c.b16 %v1722, %v1722
  %v1759 = vpack.c.b16 %v1723, %v1723
  %v1760 = vpack.c.b16 %v1724, %v1724
  %v1761 = vpack.c.b16 %v1725, %v1725
  %v1762 = vpack.c.b16 %v1726, %v1726
  %v1763 = vpack.c.b16 %v1727, %v1727
  %vm1800 = vcmask 76800
  %1801 = vst.msk [vmem:[%s3] sm:$0xf] %vm1800, %v1728
  %1802 = vst.msk [vmem:[%s3 + $0x4] sm:$0xf] %vm1800, %v1729
  %1803 = vst.msk [vmem:[%s3 + $0x8] sm:$0xf] %vm1800, %v1730
  %1804 = vst.msk [vmem:[%s3 + $0xc] sm:$0xf] %vm1800, %v1731
  %1805 = vst.msk [vmem:[%s3 + $0x10] sm:$0xf] %vm1800, %v1732
  %1806 = vst.msk [vmem:[%s3 + $0x14] sm:$0xf] %vm1800, %v1733
  %1807 = vst.msk [vmem:[%s3 + $0x18] sm:$0xf] %vm1800, %v1734
  %1808 = vst.msk [vmem:[%s3 + $0x1c] sm:$0xf] %vm1800, %v1735
  %1809 = vst.msk [vmem:[%s3 + $0x20] sm:$0xf] %vm1800, %v1736
  %1810 = vst.msk [vmem:[%s3 + $0x24] sm:$0xf] %vm1800, %v1737
  %1811 = vst.msk [vmem:[%s3 + $0x28] sm:$0xf] %vm1800, %v1738
  %1812 = vst.msk [vmem:[%s3 + $0x2c] sm:$0xf] %vm1800, %v1739
  %1813 = vst.msk [vmem:[%s3 + $0x30] sm:$0xf] %vm1800, %v1740
  %1814 = vst.msk [vmem:[%s3 + $0x34] sm:$0xf] %vm1800, %v1741
  %1815 = vst.msk [vmem:[%s3 + $0x38] sm:$0xf] %vm1800, %v1742
  %1816 = vst.msk [vmem:[%s3 + $0x3c] sm:$0xf] %vm1800, %v1743
  %1817 = vst.msk [vmem:[%s3 + $0x40] sm:$0xf] %vm1800, %v1744
  %1818 = vst.msk [vmem:[%s3 + $0x44] sm:$0xf] %vm1800, %v1745
  %1819 = vst.msk [vmem:[%s3 + $0x48] sm:$0xf] %vm1800, %v1746
  %1820 = vst.msk [vmem:[%s3 + $0x4c] sm:$0xf] %vm1800, %v1747
  %1821 = vst.msk [vmem:[%s3 + $0x50] sm:$0xf] %vm1800, %v1748
  %1822 = vst.msk [vmem:[%s3 + $0x54] sm:$0xf] %vm1800, %v1749
  %1823 = vst.msk [vmem:[%s3 + $0x58] sm:$0xf] %vm1800, %v1750
  %1824 = vst.msk [vmem:[%s3 + $0x5c] sm:$0xf] %vm1800, %v1751
  %1825 = vst.msk [vmem:[%s3 + $0x60] sm:$0xf] %vm1800, %v1752
  %1826 = vst.msk [vmem:[%s3 + $0x64] sm:$0xf] %vm1800, %v1753
  %1827 = vst.msk [vmem:[%s3 + $0x68] sm:$0xf] %vm1800, %v1754
  %1828 = vst.msk [vmem:[%s3 + $0x6c] sm:$0xf] %vm1800, %v1755
  %1829 = vst.msk [vmem:[%s3 + $0x70] sm:$0xf] %vm1800, %v1756
  %1830 = vst.msk [vmem:[%s3 + $0x74] sm:$0xf] %vm1800, %v1757
  %1831 = vst.msk [vmem:[%s3 + $0x78] sm:$0xf] %vm1800, %v1758
  %1832 = vst.msk [vmem:[%s3 + $0x7c] sm:$0xf] %vm1800, %v1759
  %1833 = vst.msk [vmem:[%s3 + $0x80] sm:$0xf] %vm1800, %v1760
  %1834 = vst.msk [vmem:[%s3 + $0x84] sm:$0xf] %vm1800, %v1761
  %1835 = vst.msk [vmem:[%s3 + $0x88] sm:$0xf] %vm1800, %v1762
  %1836 = vst.msk [vmem:[%s3 + $0x8c] sm:$0xf] %vm1800, %v1763
  // Predicated region
  $region14: #{discriminator_forward.3} parent=0 // pred_check
    _
  $region15: #{discriminator_forward.3} parent=0 // pred_check_branch
    %1838 = sbr.rel (0) target = $region17
  $region16: #{discriminator_forward.3} parent=0 // pred_region
    _
  $region17: #{discriminator_forward.3} parent=0 // pred_fallthru
    _
  // Predicated region
  $region18: #{discriminator_forward.3} parent=0 // pred_check
    _
  $region19: #{discriminator_forward.3} parent=0 // pred_check_branch
    %1840 = sbr.rel (0) target = $region21
  $region20: #{discriminator_forward.3} parent=0 // pred_region
    _
  $region21: #{discriminator_forward.3} parent=0 // pred_fallthru
    _

// kernel: discriminator_forward.5
$region0: #{discriminator_forward.5}
  #allocation0 [shape = 'u32[]', space=smem, size = 0x4, offset = 0x4, fixed_abs, tag = 'smem constant byte address 0x4 - core index']
  #allocation1 [shape = 'u32[144,128]{1,0:T(1,128)}', space=vmem, size = 0x12000, scoped, tag = 'internal scratch']
  #allocation2 [shape = 'f32[1,1]{1,0:T(1,128)S(1)}', space=vmem, size = 0x200, scoped, tag = 'scoped memory for discriminator_forward.5']
  %s0 = inlined_call_operand.vmem [shape: bf16[2,320], index: 0, kind: input, shape index: {}]
  %s1 = inlined_call_operand.vmem [shape: bf16[320,50], index: 1, kind: input, shape index: {}]
  %s2 = inlined_call_operand.vmem [shape: f32[1,50], index: 2, kind: input, shape index: {}]
  %s3 = inlined_call_operand.vmem [shape: bf16[50,1], index: 3, kind: input, shape index: {}]
  %s4 = inlined_call_operand.<no memory space> [shape: f32[1,1], index: 4, kind: input, shape index: {}]
  %s5 = inlined_call_operand.vmem [shape: f32[2,1], index: 5, kind: output, shape index: {}]
  %s6 = sld [smem:[#allocation0]]
  $region30: #{discriminator_forward.5} parent=0
    _
  %s8 = ssub.s32 1, %s6
  %s9 = scalar_select 0, %s8, %s6
  %v10 = vstv %s4
  %11 = vst [vmem:[#allocation2] sm:$0x1] %v10
  // Predicated region
  $region2: #{discriminator_forward.5} parent=0 // pred_check
    _
  $region3: #{discriminator_forward.5} parent=0 // pred_check_branch
    %13 = sbr.rel (0) target = $region5
  $region4: #{discriminator_forward.5} parent=0 // pred_region
    _
  $region5: #{discriminator_forward.5} parent=0 // pred_fallthru
    _
  // Predicated region
  $region6: #{discriminator_forward.5} parent=0 // pred_check
    _
  $region7: #{discriminator_forward.5} parent=0 // pred_check_branch
    %15 = sbr.rel (0) target = $region9
  $region8: #{discriminator_forward.5} parent=0 // pred_region
    _
  $region9: #{discriminator_forward.5} parent=0 // pred_fallthru
    _
  // Predicated region
  $region10: #{discriminator_forward.5} parent=0 // pred_check
    _
  $region11: #{discriminator_forward.5} parent=0 // pred_check_branch
    %17 = sbr.rel (0) target = $region13
  $region12: #{discriminator_forward.5} parent=0 // pred_region
    _
  $region13: #{discriminator_forward.5} parent=0 // pred_fallthru
    _
  // Predicated region
  $region14: #{discriminator_forward.5} parent=0 // pred_check
    _
  $region15: #{discriminator_forward.5} parent=0 // pred_check_branch
    %19 = sbr.rel (0) target = $region17
  $region16: #{discriminator_forward.5} parent=0 // pred_region
    _
  $region17: #{discriminator_forward.5} parent=0 // pred_fallthru
    _
  // Predicated region
  $region18: #{discriminator_forward.5} parent=0 // pred_check
    _
  $region19: #{discriminator_forward.5} parent=0 // pred_check_branch
    %21 = sbr.rel (0) target = $region21
  $region20: #{discriminator_forward.5} parent=0 // pred_region
    _
  $region21: #{discriminator_forward.5} parent=0 // pred_fallthru
    _
  %v23 = vld [vmem:[%s0] sm:$0x7]
  %v24 = vld [vmem:[%s1] sm:$0xf]
  %v25 = vld [vmem:[%s1 + $0x4] sm:$0xf]
  %v26 = vld [vmem:[%s1 + $0x8] sm:$0xf]
  %v27 = vld [vmem:[%s1 + $0xc] sm:$0xf]
  %v28 = vld [vmem:[%s1 + $0x10] sm:$0xf]
  %v29 = vld [vmem:[%s1 + $0x14] sm:$0xf]
  %v30 = vld [vmem:[%s1 + $0x18] sm:$0xf]
  %v31 = vld [vmem:[%s1 + $0x1c] sm:$0xf]
  %v32 = vld [vmem:[%s1 + $0x20] sm:$0xf]
  %v33 = vld [vmem:[%s1 + $0x24] sm:$0xf]
  %v34 = vld [vmem:[%s1 + $0x28] sm:$0xf]
  %v35 = vld [vmem:[%s1 + $0x2c] sm:$0xf]
  %v36 = vld [vmem:[%s1 + $0x30] sm:$0xf]
  %v37 = vld [vmem:[%s1 + $0x34] sm:$0xf]
  %v38 = vld [vmem:[%s1 + $0x38] sm:$0xf]
  %v39 = vld [vmem:[%s1 + $0x3c] sm:$0xf]
  %v40 = vld [vmem:[%s1 + $0x40] sm:$0xf]
  %v41 = vld [vmem:[%s1 + $0x44] sm:$0xf]
  %v42 = vld [vmem:[%s1 + $0x48] sm:$0xf]
  %v43 = vld [vmem:[%s1 + $0x4c] sm:$0xf]
  %v44 = vld [vmem:[%s1 + $0x50] sm:$0xf]
  %v45 = vld [vmem:[%s1 + $0x54] sm:$0xf]
  %v46 = vld [vmem:[%s1 + $0x58] sm:$0xf]
  %v47 = vld [vmem:[%s1 + $0x5c] sm:$0xf]
  %v48 = vld [vmem:[%s1 + $0x60] sm:$0xf]
  %v49 = vld [vmem:[%s1 + $0x64] sm:$0xf]
  %v50 = vld [vmem:[%s1 + $0x68] sm:$0xf]
  %v51 = vld [vmem:[%s1 + $0x6c] sm:$0xf]
  %v52 = vld [vmem:[%s1 + $0x70] sm:$0xf]
  %v53 = vld [vmem:[%s1 + $0x74] sm:$0xf]
  %v54 = vld [vmem:[%s1 + $0x78] sm:$0xf]
  %v55 = vld [vmem:[%s1 + $0x7c] sm:$0xf]
  %v56 = vld [vmem:[%s1 + $0x80] sm:$0xf]
  %v57 = vld [vmem:[%s1 + $0x84] sm:$0xf]
  %v58 = vld [vmem:[%s1 + $0x88] sm:$0xf]
  %v59 = vld [vmem:[%s1 + $0x8c] sm:$0xf]
  %v60 = vld [vmem:[%s1 + $0x90] sm:$0xf]
  %v61 = vld [vmem:[%s1 + $0x94] sm:$0xf]
  %v62 = vld [vmem:[%s1 + $0x98] sm:$0xf]
  %v63 = vld [vmem:[%s1 + $0x9c] sm:$0xf]
  %v64 = vld [vmem:[%s2] sm:$0x1]
  %v66 = vlaneseq
  %v67 = vshrl.u32 %v66, 7
  %v68 = vsub.s32 0, %v67
  %v69 = vrot.slane %v64, %v68
  %v73 = vunpack.c.l.s4 1966171168
  %v74 = vunpack.c.0.s8 %v73
  %v75 = vlaneseq
  %v76 = vshrl.u32 %v75, 7
  %v77 = vsub.s32 %v74, %v76
  %v78 = vrot.slane %v23, %v77
  %v79 = vcombine.high %v78, %v78
  %v81 = vunpack.c.l.s4 1966171168
  %v82 = vunpack.c.0.s8 %v81
  %v83 = vlaneseq
  %v84 = vshrl.u32 %v83, 7
  %v85 = vsub.s32 %v82, %v84
  %v86 = vrot.slane %v78, %v85
  %v88 = vunpack.c.l.s4 1966171168
  %v89 = vunpack.c.0.s8 %v88
  %v90 = vlaneseq
  %v91 = vshrl.u32 %v90, 7
  %v92 = vsub.s32 %v89, %v91
  %v93 = vrot.slane %v79, %v92
  %v94 = vcombine.high %v86, %v86
  %v137 = vunpack.c.l.b16 %v24
  %v138 = vunpack.c.l.b16 %v25
  %v139 = vunpack.c.l.b16 %v26
  %v140 = vunpack.c.l.b16 %v27
  %v141 = vunpack.c.l.b16 %v28
  %v142 = vunpack.c.l.b16 %v29
  %v143 = vunpack.c.l.b16 %v30
  %v144 = vunpack.c.l.b16 %v31
  %v145 = vunpack.c.l.b16 %v32
  %v146 = vunpack.c.l.b16 %v33
  %v147 = vunpack.c.l.b16 %v34
  %v148 = vunpack.c.l.b16 %v35
  %v149 = vunpack.c.l.b16 %v36
  %v150 = vunpack.c.l.b16 %v37
  %v151 = vunpack.c.l.b16 %v38
  %v152 = vunpack.c.l.b16 %v39
  %v153 = vunpack.c.l.b16 %v40
  %v154 = vunpack.c.l.b16 %v41
  %v155 = vunpack.c.l.b16 %v42
  %v156 = vunpack.c.l.b16 %v43
  %v157 = vunpack.c.l.b16 %v44
  %v158 = vunpack.c.l.b16 %v45
  %v159 = vunpack.c.l.b16 %v46
  %v160 = vunpack.c.l.b16 %v47
  %v161 = vunpack.c.l.b16 %v48
  %v162 = vunpack.c.l.b16 %v49
  %v163 = vunpack.c.l.b16 %v50
  %v164 = vunpack.c.l.b16 %v51
  %v165 = vunpack.c.l.b16 %v52
  %v166 = vunpack.c.l.b16 %v53
  %v167 = vunpack.c.l.b16 %v54
  %v168 = vunpack.c.l.b16 %v55
  %v169 = vunpack.c.l.b16 %v56
  %v170 = vunpack.c.l.b16 %v57
  %v171 = vunpack.c.l.b16 %v58
  %v172 = vunpack.c.l.b16 %v59
  %v173 = vunpack.c.l.b16 %v60
  %v174 = vunpack.c.l.b16 %v61
  %v175 = vunpack.c.l.b16 %v62
  %v176 = vunpack.c.l.b16 %v63
  %v177 = vpack.c.b16 %v138, %v137
  %v178 = vpack.c.b16 %v140, %v139
  %v179 = vpack.c.b16 %v142, %v141
  %v180 = vpack.c.b16 %v144, %v143
  %v181 = vpack.c.b16 %v146, %v145
  %v182 = vpack.c.b16 %v148, %v147
  %v183 = vpack.c.b16 %v150, %v149
  %v184 = vpack.c.b16 %v152, %v151
  %v185 = vpack.c.b16 %v154, %v153
  %v186 = vpack.c.b16 %v156, %v155
  %v187 = vpack.c.b16 %v158, %v157
  %v188 = vpack.c.b16 %v160, %v159
  %v189 = vpack.c.b16 %v162, %v161
  %v190 = vpack.c.b16 %v164, %v163
  %v191 = vpack.c.b16 %v166, %v165
  %v192 = vpack.c.b16 %v168, %v167
  %v193 = vpack.c.b16 %v170, %v169
  %v194 = vpack.c.b16 %v172, %v171
  %v195 = vpack.c.b16 %v174, %v173
  %v196 = vpack.c.b16 %v176, %v175
  %vm217 = vcmask 523264
  %v219 = vsel %vm217, %v94, 0
  %221 = vmatprep.subr.bf16.mxu0 0
  %222 = vmatpush1.bf16.msra.mxu0 %v177
  %223 = vmatprep.subr.bf16.mxu0 0
  %224 = vmatpush1.bf16.msra.mxu0 %v178
  %225 = vmatprep.subr.bf16.mxu0 0
  %226 = vmatpush1.bf16.msra.mxu0 %v179
  %227 = vmatprep.subr.bf16.mxu0 0
  %228 = vmatpush1.bf16.msra.mxu0 %v180
  %229 = vmatprep.subr.bf16.mxu0 0
  %230 = vmatpush1.bf16.msra.mxu0 %v181
  %231 = vmatprep.subr.bf16.mxu0 0
  %232 = vmatpush1.bf16.msra.mxu0 %v182
  %233 = vmatprep.subr.bf16.mxu0 0
  %234 = vmatpush1.bf16.msra.mxu0 %v183
  %235 = vmatprep.subr.bf16.mxu0 0
  %236 = vmatpush1.bf16.msra.mxu0 %v184
  %237 = vmatprep.subr.bf16.mxu0 0
  %238 = vmatpush1.bf16.msra.mxu0 %v185
  %239 = vmatprep.subr.bf16.mxu0 0
  %240 = vmatpush1.bf16.msra.mxu0 %v186
  %241 = vmatprep.subr.bf16.mxu0 0
  %242 = vmatpush1.bf16.msra.mxu0 %v187
  %243 = vmatprep.subr.bf16.mxu0 0
  %244 = vmatpush1.bf16.msra.mxu0 %v188
  %245 = vmatprep.subr.bf16.mxu0 0
  %246 = vmatpush1.bf16.msra.mxu0 %v189
  %247 = vmatprep.subr.bf16.mxu0 0
  %248 = vmatpush1.bf16.msra.mxu0 %v190
  %249 = vmatprep.subr.bf16.mxu0 0
  %250 = vmatpush1.bf16.msra.mxu0 %v191
  %251 = vmatprep.subr.bf16.mxu0 0
  %252 = vmatpush1.bf16.msra.mxu0 %v192
  %253 = vmatprep.mubr.bf16.mxu0 %v93
  %254 = vmatmul.mubr.bf16.gmra.mrb[0].mxu0 %v86
  %v255 = vpop.f32.mrb[0].mxu0
  %v256 = vadd.f32 %v69, %v255
  %v257 = vpop.f32.mrb[0].mxu0
  %v258 = vpop.f32.mrb[0].mxu0
  %v259 = vpop.f32.mrb[0].mxu0
  %260 = vdwg.mxu0
  %261 = vmatprep.subr.bf16.mxu0 0
  %262 = vmatpush1.bf16.msra.mxu0 %v193
  %263 = vmatprep.subr.bf16.mxu0 0
  %264 = vmatpush1.bf16.msra.mxu0 %v194
  %265 = vmatprep.subr.bf16.mxu0 0
  %266 = vmatpush1.bf16.msra.mxu0 %v195
  %267 = vmatprep.subr.bf16.mxu0 0
  %268 = vmatpush1.bf16.msra.mxu0 %v196
  %269 = vmatprep.subr.bf16.mxu0 0
  %270 = vmatpush1.bf16.msra.mxu0 0
  %271 = vmatprep.subr.bf16.mxu0 0
  %272 = vmatpush1.bf16.msra.mxu0 0
  %273 = vmatprep.subr.bf16.mxu0 0
  %274 = vmatpush1.bf16.msra.mxu0 0
  %275 = vmatprep.subr.bf16.mxu0 0
  %276 = vmatpush1.bf16.msra.mxu0 0
  %277 = vmatprep.subr.bf16.mxu0 0
  %278 = vmatpush1.bf16.msra.mxu0 0
  %279 = vmatprep.subr.bf16.mxu0 0
  %280 = vmatpush1.bf16.msra.mxu0 0
  %281 = vmatprep.subr.bf16.mxu0 0
  %282 = vmatpush1.bf16.msra.mxu0 0
  %283 = vmatprep.subr.bf16.mxu0 0
  %284 = vmatpush1.bf16.msra.mxu0 0
  %285 = vmatprep.subr.bf16.mxu0 0
  %286 = vmatpush1.bf16.msra.mxu0 0
  %287 = vmatprep.subr.bf16.mxu0 0
  %288 = vmatpush1.bf16.msra.mxu0 0
  %289 = vmatprep.subr.bf16.mxu0 0
  %290 = vmatpush1.bf16.msra.mxu0 0
  %291 = vmatprep.subr.bf16.mxu0 0
  %292 = vmatpush1.bf16.msra.mxu0 0
  %293 = vmatprep.mubr.bf16.mxu0 0
  %294 = vmatmul.mubr.bf16.gmra.mrb[0].mxu0 %v219
  %v295 = vpop.f32.mrb[0].mxu0
  %v296 = vadd.f32 %v256, %v295
  %v297 = vpop.f32.mrb[0].mxu0
  %v298 = vpop.f32.mrb[0].mxu0
  %v299 = vpop.f32.mrb[0].mxu0
  %300 = vdwg.mxu0
  %v301 = vmax.f32 %v296, 0.0
  %v302 = vpack.c.bf16 %v301, %v301
  %v303 = vld [vmem:[%s3] sm:$0xf]
  %v304 = vld [vmem:[%s3 + $0x4] sm:$0xf]
  %v305 = vld [vmem:[%s3 + $0x8] sm:$0xf]
  %v306 = vld [vmem:[%s3 + $0xc] sm:$0xf]
  %v307 = vld [vmem:[%s3 + $0x10] sm:$0xf]
  %v308 = vld [vmem:[%s3 + $0x14] sm:$0xf]
  %v309 = vld [vmem:[%s3 + $0x18] sm:$0x1]
  %v310 = vld [vmem:[#allocation2] sm:$0x1]
  %v312 = vlaneseq
  %v313 = vshrl.u32 %v312, 7
  %v314 = vsub.s32 0, %v313
  %v315 = vrot.slane %v310, %v314
  %v324 = vunpack.c.l.b16 %v303
  %v325 = vunpack.c.l.b16 %v304
  %v326 = vunpack.c.l.b16 %v305
  %v327 = vunpack.c.l.b16 %v306
  %v328 = vunpack.c.l.b16 %v307
  %v329 = vunpack.c.l.b16 %v308
  %v330 = vunpack.c.l.b16 %v309
  %v331 = vpack.c.b16 %v325, %v324
  %v332 = vpack.c.b16 %v327, %v326
  %v333 = vpack.c.b16 %v329, %v328
  %v334 = vpack.c.b16 %v330, %v330
  %vm338 = vcmask 408576
  %v340 = vsel %vm338, %v302, 0
  %vm342 = vcmask 1040384
  %v344 = vsel %vm342, %v334, 0
  %346 = vmatprep.subr.bf16.mxu0 0
  %347 = vmatpush1.bf16.msra.mxu0 %v331
  %348 = vmatprep.subr.bf16.mxu0 0
  %349 = vmatpush1.bf16.msra.mxu0 %v332
  %350 = vmatprep.subr.bf16.mxu0 0
  %351 = vmatpush1.bf16.msra.mxu0 %v333
  %352 = vmatprep.subr.bf16.mxu0 0
  %353 = vmatpush1.bf16.msra.mxu0 %v344
  %354 = vmatprep.subr.bf16.mxu0 0
  %355 = vmatpush1.bf16.msra.mxu0 0
  %356 = vmatprep.subr.bf16.mxu0 0
  %357 = vmatpush1.bf16.msra.mxu0 0
  %358 = vmatprep.subr.bf16.mxu0 0
  %359 = vmatpush1.bf16.msra.mxu0 0
  %360 = vmatprep.subr.bf16.mxu0 0
  %361 = vmatpush1.bf16.msra.mxu0 0
  %362 = vmatprep.subr.bf16.mxu0 0
  %363 = vmatpush1.bf16.msra.mxu0 0
  %364 = vmatprep.subr.bf16.mxu0 0
  %365 = vmatpush1.bf16.msra.mxu0 0
  %366 = vmatprep.subr.bf16.mxu0 0
  %367 = vmatpush1.bf16.msra.mxu0 0
  %368 = vmatprep.subr.bf16.mxu0 0
  %369 = vmatpush1.bf16.msra.mxu0 0
  %370 = vmatprep.subr.bf16.mxu0 0
  %371 = vmatpush1.bf16.msra.mxu0 0
  %372 = vmatprep.subr.bf16.mxu0 0
  %373 = vmatpush1.bf16.msra.mxu0 0
  %374 = vmatprep.subr.bf16.mxu0 0
  %375 = vmatpush1.bf16.msra.mxu0 0
  %376 = vmatprep.subr.bf16.mxu0 0
  %377 = vmatpush1.bf16.msra.mxu0 0
  %378 = vmatprep.mubr.bf16.mxu0 0
  %379 = vmatmul.mubr.bf16.gmra.mrb[0].mxu0 %v340
  %v380 = vpop.f32.mrb[0].mxu0
  %v381 = vadd.f32 %v315, %v380
  %v382 = vpop.f32.mrb[0].mxu0
  %v383 = vpop.f32.mrb[0].mxu0
  %v384 = vpop.f32.mrb[0].mxu0
  %385 = vdwg.mxu0
  %v386 = vsub.f32 0.0, %v381
  %v387 = vmul.f32 %v386, 1.442695
  %v388 = vpow.pop %v387
  %v389 = vadd.f32 %v388, 1.0
  %v390 = vrcp.pop %v389
  %v391 = vmul.f32 1.0, %v390
  %vm392 = vcmask 1024
  %393 = vst.msk [vmem:[%s5] sm:$0x3] %vm392, %v391
  // Predicated region
  $region22: #{discriminator_forward.5} parent=0 // pred_check
    _
  $region23: #{discriminator_forward.5} parent=0 // pred_check_branch
    %395 = sbr.rel (0) target = $region25
  $region24: #{discriminator_forward.5} parent=0 // pred_region
    _
  $region25: #{discriminator_forward.5} parent=0 // pred_fallthru
    _
  // Predicated region
  $region26: #{discriminator_forward.5} parent=0 // pred_check
    _
  $region27: #{discriminator_forward.5} parent=0 // pred_check_branch
    %397 = sbr.rel (0) target = $region29
  $region28: #{discriminator_forward.5} parent=0 // pred_region
    _
  $region29: #{discriminator_forward.5} parent=0 // pred_fallthru
    _

// kernel: discriminator_forward.4
$region0: #{discriminator_forward.4}
  #allocation0 [shape = 'u32[]', space=smem, size = 0x4, offset = 0x4, fixed_abs, tag = 'smem constant byte address 0x4 - core index']
  #allocation1 [shape = 'u32[144,128]{1,0:T(1,128)}', space=vmem, size = 0x12000, scoped, tag = 'internal scratch']
  %s0 = inlined_call_operand.vmem [shape: bf16[4,32,250], index: 0, kind: input, shape index: {}]
  %s1 = inlined_call_operand.vmem [shape: bf16[250,20], index: 1, kind: input, shape index: {}]
  %s2 = inlined_call_operand.vmem [shape: f32[1,20], index: 2, kind: input, shape index: {}]
  %s3 = inlined_call_operand.vmem [shape: bf16[32,20], index: 3, kind: output, shape index: {}]
  %s4 = sld [smem:[#allocation0]]
  $region22: #{discriminator_forward.4} parent=0
    _
  %s6 = ssub.s32 1, %s4
  %s7 = scalar_select 0, %s6, %s4
  // Predicated region
  $region2: #{discriminator_forward.4} parent=0 // pred_check
    _
  $region3: #{discriminator_forward.4} parent=0 // pred_check_branch
    %9 = sbr.rel (0) target = $region5
  $region4: #{discriminator_forward.4} parent=0 // pred_region
    _
  $region5: #{discriminator_forward.4} parent=0 // pred_fallthru
    _
  // Predicated region
  $region6: #{discriminator_forward.4} parent=0 // pred_check
    _
  $region7: #{discriminator_forward.4} parent=0 // pred_check_branch
    %11 = sbr.rel (0) target = $region9
  $region8: #{discriminator_forward.4} parent=0 // pred_region
    _
  $region9: #{discriminator_forward.4} parent=0 // pred_fallthru
    _
  // Predicated region
  $region10: #{discriminator_forward.4} parent=0 // pred_check
    _
  $region11: #{discriminator_forward.4} parent=0 // pred_check_branch
    %13 = sbr.rel (0) target = $region13
  $region12: #{discriminator_forward.4} parent=0 // pred_region
    _
  $region13: #{discriminator_forward.4} parent=0 // pred_fallthru
    _
  %v15 = vld [vmem:[%s1] sm:$0xf]
  %v16 = vld [vmem:[%s1 + $0x4] sm:$0xf]
  %v17 = vld [vmem:[%s1 + $0x8] sm:$0xf]
  %v18 = vld [vmem:[%s1 + $0xc] sm:$0xf]
  %v19 = vld [vmem:[%s1 + $0x10] sm:$0xf]
  %v20 = vld [vmem:[%s1 + $0x14] sm:$0xf]
  %v21 = vld [vmem:[%s1 + $0x18] sm:$0xf]
  %v22 = vld [vmem:[%s1 + $0x1c] sm:$0xf]
  %v23 = vld [vmem:[%s1 + $0x20] sm:$0xf]
  %v24 = vld [vmem:[%s1 + $0x24] sm:$0xf]
  %v25 = vld [vmem:[%s1 + $0x28] sm:$0xf]
  %v26 = vld [vmem:[%s1 + $0x2c] sm:$0xf]
  %v27 = vld [vmem:[%s1 + $0x30] sm:$0xf]
  %v28 = vld [vmem:[%s1 + $0x34] sm:$0xf]
  %v29 = vld [vmem:[%s1 + $0x38] sm:$0xf]
  %v30 = vld [vmem:[%s1 + $0x3c] sm:$0xf]
  %v31 = vld [vmem:[%s1 + $0x40] sm:$0xf]
  %v32 = vld [vmem:[%s1 + $0x44] sm:$0xf]
  %v33 = vld [vmem:[%s1 + $0x48] sm:$0xf]
  %v34 = vld [vmem:[%s1 + $0x4c] sm:$0xf]
  %v35 = vld [vmem:[%s1 + $0x50] sm:$0xf]
  %v36 = vld [vmem:[%s1 + $0x54] sm:$0xf]
  %v37 = vld [vmem:[%s1 + $0x58] sm:$0xf]
  %v38 = vld [vmem:[%s1 + $0x5c] sm:$0xf]
  %v39 = vld [vmem:[%s1 + $0x60] sm:$0xf]
  %v40 = vld [vmem:[%s1 + $0x64] sm:$0xf]
  %v41 = vld [vmem:[%s1 + $0x68] sm:$0xf]
  %v42 = vld [vmem:[%s1 + $0x6c] sm:$0xf]
  %v43 = vld [vmem:[%s1 + $0x70] sm:$0xf]
  %v44 = vld [vmem:[%s1 + $0x74] sm:$0xf]
  %v45 = vld [vmem:[%s1 + $0x78] sm:$0xf]
  %v46 = vld [vmem:[%s1 + $0x7c] sm:$0x1]
  %v47 = vld [vmem:[%s0] sm:$0xff]
  %v48 = vld [vmem:[%s0 + $0x8] sm:$0xff]
  %v49 = vld [vmem:[%s0 + $0x10] sm:$0xff]
  %v50 = vld [vmem:[%s0 + $0x18] sm:$0xff]
  %v55 = vunpack.c.l.b16 %v47
  %v56 = vunpack.c.h.b16 %v47
  %v57 = vunpack.c.l.b16 %v48
  %v58 = vunpack.c.h.b16 %v48
  %v59 = vunpack.c.l.b16 %v49
  %v60 = vunpack.c.h.b16 %v49
  %v61 = vunpack.c.l.b16 %v50
  %v62 = vunpack.c.h.b16 %v50
  %v63 = vpack.c.b16 %v57, %v55
  %v64 = vpack.c.b16 %v58, %v56
  %v65 = vpack.c.b16 %v61, %v59
  %v66 = vpack.c.b16 %v62, %v60
  %v101 = vunpack.c.l.b16 %v15
  %v102 = vunpack.c.l.b16 %v16
  %v103 = vunpack.c.l.b16 %v17
  %v104 = vunpack.c.l.b16 %v18
  %v105 = vunpack.c.l.b16 %v19
  %v106 = vunpack.c.l.b16 %v20
  %v107 = vunpack.c.l.b16 %v21
  %v108 = vunpack.c.l.b16 %v22
  %v109 = vunpack.c.l.b16 %v23
  %v110 = vunpack.c.l.b16 %v24
  %v111 = vunpack.c.l.b16 %v25
  %v112 = vunpack.c.l.b16 %v26
  %v113 = vunpack.c.l.b16 %v27
  %v114 = vunpack.c.l.b16 %v28
  %v115 = vunpack.c.l.b16 %v29
  %v116 = vunpack.c.l.b16 %v30
  %v117 = vunpack.c.l.b16 %v31
  %v118 = vunpack.c.l.b16 %v32
  %v119 = vunpack.c.l.b16 %v33
  %v120 = vunpack.c.l.b16 %v34
  %v121 = vunpack.c.l.b16 %v35
  %v122 = vunpack.c.l.b16 %v36
  %v123 = vunpack.c.l.b16 %v37
  %v124 = vunpack.c.l.b16 %v38
  %v125 = vunpack.c.l.b16 %v39
  %v126 = vunpack.c.l.b16 %v40
  %v127 = vunpack.c.l.b16 %v41
  %v128 = vunpack.c.l.b16 %v42
  %v129 = vunpack.c.l.b16 %v43
  %v130 = vunpack.c.l.b16 %v44
  %v131 = vunpack.c.l.b16 %v45
  %v132 = vunpack.c.l.b16 %v46
  %v133 = vpack.c.b16 %v102, %v101
  %v134 = vpack.c.b16 %v104, %v103
  %v135 = vpack.c.b16 %v106, %v105
  %v136 = vpack.c.b16 %v108, %v107
  %v137 = vpack.c.b16 %v110, %v109
  %v138 = vpack.c.b16 %v112, %v111
  %v139 = vpack.c.b16 %v114, %v113
  %v140 = vpack.c.b16 %v116, %v115
  %v141 = vpack.c.b16 %v118, %v117
  %v142 = vpack.c.b16 %v120, %v119
  %v143 = vpack.c.b16 %v122, %v121
  %v144 = vpack.c.b16 %v124, %v123
  %v145 = vpack.c.b16 %v126, %v125
  %v146 = vpack.c.b16 %v128, %v127
  %v147 = vpack.c.b16 %v130, %v129
  %v148 = vpack.c.b16 %v132, %v131
  %vm164 = vcmask 998400
  %v166 = vsel %vm164, %v64, 0
  %v169 = vsel %vm164, %v66, 0
  %vm171 = vcmask 1044480
  %v173 = vsel %vm171, %v148, 0
  %175 = vmatprep.subr.bf16.mxu0 0
  %176 = vmatpush1.bf16.msra.mxu0 %v133
  %177 = vmatprep.subr.bf16.mxu0 0
  %178 = vmatpush1.bf16.msra.mxu0 %v134
  %179 = vmatprep.subr.bf16.mxu0 0
  %180 = vmatpush1.bf16.msra.mxu0 %v135
  %181 = vmatprep.subr.bf16.mxu0 0
  %182 = vmatpush1.bf16.msra.mxu0 %v136
  %183 = vmatprep.subr.bf16.mxu0 0
  %184 = vmatpush1.bf16.msra.mxu0 %v137
  %185 = vmatprep.subr.bf16.mxu0 0
  %186 = vmatpush1.bf16.msra.mxu0 %v138
  %187 = vmatprep.subr.bf16.mxu0 0
  %188 = vmatpush1.bf16.msra.mxu0 %v139
  %189 = vmatprep.subr.bf16.mxu0 0
  %190 = vmatpush1.bf16.msra.mxu0 %v140
  %191 = vmatprep.subr.bf16.mxu0 0
  %192 = vmatpush1.bf16.msra.mxu0 %v141
  %193 = vmatprep.subr.bf16.mxu0 0
  %194 = vmatpush1.bf16.msra.mxu0 %v142
  %195 = vmatprep.subr.bf16.mxu0 0
  %196 = vmatpush1.bf16.msra.mxu0 %v143
  %197 = vmatprep.subr.bf16.mxu0 0
  %198 = vmatpush1.bf16.msra.mxu0 %v144
  %199 = vmatprep.subr.bf16.mxu0 0
  %200 = vmatpush1.bf16.msra.mxu0 %v145
  %201 = vmatprep.subr.bf16.mxu0 0
  %202 = vmatpush1.bf16.msra.mxu0 %v146
  %203 = vmatprep.subr.bf16.mxu0 0
  %204 = vmatpush1.bf16.msra.mxu0 %v147
  %205 = vmatprep.subr.bf16.mxu0 0
  %206 = vmatpush1.bf16.msra.mxu0 %v173
  %207 = vmatprep.mubr.bf16.mxu0 %v166
  %208 = vmatmul.mubr.bf16.gmra.mrb[0].mxu0 %v63
  %v209 = vpop.f32.mrb[0].mxu0
  %v210 = vadd.f32 0.0, %v209
  %v211 = vpop.f32.mrb[0].mxu0
  %v212 = vpop.f32.mrb[0].mxu0
  %v213 = vadd.f32 0.0, %v212
  %v214 = vpop.f32.mrb[0].mxu0
  %215 = vmatprep.mubr.bf16.mxu0 %v169
  %216 = vmatmul.mubr.bf16.gmra.mrb[0].mxu0 %v65
  %v217 = vpop.f32.mrb[0].mxu0
  %v218 = vadd.f32 0.0, %v217
  %v219 = vpop.f32.mrb[0].mxu0
  %v220 = vpop.f32.mrb[0].mxu0
  %v221 = vadd.f32 0.0, %v220
  %v222 = vpop.f32.mrb[0].mxu0
  %223 = vdwg.mxu0
  %s224 = scalar_lea.vmem %s0, 32
  %v225 = vld [vmem:[%s224] sm:$0xff]
  %v226 = vld [vmem:[%s224 + $0x8] sm:$0xff]
  %v227 = vld [vmem:[%s224 + $0x10] sm:$0xff]
  %v228 = vld [vmem:[%s224 + $0x18] sm:$0xff]
  %v233 = vunpack.c.l.b16 %v225
  %v234 = vunpack.c.h.b16 %v225
  %v235 = vunpack.c.l.b16 %v226
  %v236 = vunpack.c.h.b16 %v226
  %v237 = vunpack.c.l.b16 %v227
  %v238 = vunpack.c.h.b16 %v227
  %v239 = vunpack.c.l.b16 %v228
  %v240 = vunpack.c.h.b16 %v228
  %v241 = vpack.c.b16 %v235, %v233
  %v242 = vpack.c.b16 %v236, %v234
  %v243 = vpack.c.b16 %v239, %v237
  %v244 = vpack.c.b16 %v240, %v238
  %v248 = vsel %vm164, %v242, 0
  %v251 = vsel %vm164, %v244, 0
  %253 = vmatprep.subr.bf16.mxu0 0
  %254 = vmatpush1.bf16.msra.mxu0 %v133
  %255 = vmatprep.subr.bf16.mxu0 0
  %256 = vmatpush1.bf16.msra.mxu0 %v134
  %257 = vmatprep.subr.bf16.mxu0 0
  %258 = vmatpush1.bf16.msra.mxu0 %v135
  %259 = vmatprep.subr.bf16.mxu0 0
  %260 = vmatpush1.bf16.msra.mxu0 %v136
  %261 = vmatprep.subr.bf16.mxu0 0
  %262 = vmatpush1.bf16.msra.mxu0 %v137
  %263 = vmatprep.subr.bf16.mxu0 0
  %264 = vmatpush1.bf16.msra.mxu0 %v138
  %265 = vmatprep.subr.bf16.mxu0 0
  %266 = vmatpush1.bf16.msra.mxu0 %v139
  %267 = vmatprep.subr.bf16.mxu0 0
  %268 = vmatpush1.bf16.msra.mxu0 %v140
  %269 = vmatprep.subr.bf16.mxu0 0
  %270 = vmatpush1.bf16.msra.mxu0 %v141
  %271 = vmatprep.subr.bf16.mxu0 0
  %272 = vmatpush1.bf16.msra.mxu0 %v142
  %273 = vmatprep.subr.bf16.mxu0 0
  %274 = vmatpush1.bf16.msra.mxu0 %v143
  %275 = vmatprep.subr.bf16.mxu0 0
  %276 = vmatpush1.bf16.msra.mxu0 %v144
  %277 = vmatprep.subr.bf16.mxu0 0
  %278 = vmatpush1.bf16.msra.mxu0 %v145
  %279 = vmatprep.subr.bf16.mxu0 0
  %280 = vmatpush1.bf16.msra.mxu0 %v146
  %281 = vmatprep.subr.bf16.mxu0 0
  %282 = vmatpush1.bf16.msra.mxu0 %v147
  %283 = vmatprep.subr.bf16.mxu0 0
  %284 = vmatpush1.bf16.msra.mxu0 %v173
  %285 = vmatprep.mubr.bf16.mxu0 %v248
  %286 = vmatmul.mubr.bf16.gmra.mrb[0].mxu0 %v241
  %v287 = vpop.f32.mrb[0].mxu0
  %v288 = vadd.f32 0.0, %v287
  %v289 = vpop.f32.mrb[0].mxu0
  %v290 = vpop.f32.mrb[0].mxu0
  %v291 = vadd.f32 0.0, %v290
  %v292 = vpop.f32.mrb[0].mxu0
  %293 = vmatprep.mubr.bf16.mxu0 %v251
  %294 = vmatmul.mubr.bf16.gmra.mrb[0].mxu0 %v243
  %v295 = vpop.f32.mrb[0].mxu0
  %v296 = vadd.f32 0.0, %v295
  %v297 = vpop.f32.mrb[0].mxu0
  %v298 = vpop.f32.mrb[0].mxu0
  %v299 = vadd.f32 0.0, %v298
  %v300 = vpop.f32.mrb[0].mxu0
  %301 = vdwg.mxu0
  %s302 = scalar_lea.vmem %s0, 64
  %v303 = vld [vmem:[%s302] sm:$0xff]
  %v304 = vld [vmem:[%s302 + $0x8] sm:$0xff]
  %v305 = vld [vmem:[%s302 + $0x10] sm:$0xff]
  %v306 = vld [vmem:[%s302 + $0x18] sm:$0xff]
  %v311 = vunpack.c.l.b16 %v303
  %v312 = vunpack.c.h.b16 %v303
  %v313 = vunpack.c.l.b16 %v304
  %v314 = vunpack.c.h.b16 %v304
  %v315 = vunpack.c.l.b16 %v305
  %v316 = vunpack.c.h.b16 %v305
  %v317 = vunpack.c.l.b16 %v306
  %v318 = vunpack.c.h.b16 %v306
  %v319 = vpack.c.b16 %v313, %v311
  %v320 = vpack.c.b16 %v314, %v312
  %v321 = vpack.c.b16 %v317, %v315
  %v322 = vpack.c.b16 %v318, %v316
  %v326 = vsel %vm164, %v320, 0
  %v329 = vsel %vm164, %v322, 0
  %331 = vmatprep.subr.bf16.mxu0 0
  %332 = vmatpush1.bf16.msra.mxu0 %v133
  %333 = vmatprep.subr.bf16.mxu0 0
  %334 = vmatpush1.bf16.msra.mxu0 %v134
  %335 = vmatprep.subr.bf16.mxu0 0
  %336 = vmatpush1.bf16.msra.mxu0 %v135
  %337 = vmatprep.subr.bf16.mxu0 0
  %338 = vmatpush1.bf16.msra.mxu0 %v136
  %339 = vmatprep.subr.bf16.mxu0 0
  %340 = vmatpush1.bf16.msra.mxu0 %v137
  %341 = vmatprep.subr.bf16.mxu0 0
  %342 = vmatpush1.bf16.msra.mxu0 %v138
  %343 = vmatprep.subr.bf16.mxu0 0
  %344 = vmatpush1.bf16.msra.mxu0 %v139
  %345 = vmatprep.subr.bf16.mxu0 0
  %346 = vmatpush1.bf16.msra.mxu0 %v140
  %347 = vmatprep.subr.bf16.mxu0 0
  %348 = vmatpush1.bf16.msra.mxu0 %v141
  %349 = vmatprep.subr.bf16.mxu0 0
  %350 = vmatpush1.bf16.msra.mxu0 %v142
  %351 = vmatprep.subr.bf16.mxu0 0
  %352 = vmatpush1.bf16.msra.mxu0 %v143
  %353 = vmatprep.subr.bf16.mxu0 0
  %354 = vmatpush1.bf16.msra.mxu0 %v144
  %355 = vmatprep.subr.bf16.mxu0 0
  %356 = vmatpush1.bf16.msra.mxu0 %v145
  %357 = vmatprep.subr.bf16.mxu0 0
  %358 = vmatpush1.bf16.msra.mxu0 %v146
  %359 = vmatprep.subr.bf16.mxu0 0
  %360 = vmatpush1.bf16.msra.mxu0 %v147
  %361 = vmatprep.subr.bf16.mxu0 0
  %362 = vmatpush1.bf16.msra.mxu0 %v173
  %363 = vmatprep.mubr.bf16.mxu0 %v326
  %364 = vmatmul.mubr.bf16.gmra.mrb[0].mxu0 %v319
  %v365 = vpop.f32.mrb[0].mxu0
  %v366 = vadd.f32 0.0, %v365
  %v367 = vpop.f32.mrb[0].mxu0
  %v368 = vpop.f32.mrb[0].mxu0
  %v369 = vadd.f32 0.0, %v368
  %v370 = vpop.f32.mrb[0].mxu0
  %371 = vmatprep.mubr.bf16.mxu0 %v329
  %372 = vmatmul.mubr.bf16.gmra.mrb[0].mxu0 %v321
  %v373 = vpop.f32.mrb[0].mxu0
  %v374 = vadd.f32 0.0, %v373
  %v375 = vpop.f32.mrb[0].mxu0
  %v376 = vpop.f32.mrb[0].mxu0
  %v377 = vadd.f32 0.0, %v376
  %v378 = vpop.f32.mrb[0].mxu0
  %379 = vdwg.mxu0
  %s380 = scalar_lea.vmem %s0, 96
  %v381 = vld [vmem:[%s380] sm:$0xff]
  %v382 = vld [vmem:[%s380 + $0x8] sm:$0xff]
  %v383 = vld [vmem:[%s380 + $0x10] sm:$0xff]
  %v384 = vld [vmem:[%s380 + $0x18] sm:$0xff]
  %v389 = vunpack.c.l.b16 %v381
  %v390 = vunpack.c.h.b16 %v381
  %v391 = vunpack.c.l.b16 %v382
  %v392 = vunpack.c.h.b16 %v382
  %v393 = vunpack.c.l.b16 %v383
  %v394 = vunpack.c.h.b16 %v383
  %v395 = vunpack.c.l.b16 %v384
  %v396 = vunpack.c.h.b16 %v384
  %v397 = vpack.c.b16 %v391, %v389
  %v398 = vpack.c.b16 %v392, %v390
  %v399 = vpack.c.b16 %v395, %v393
  %v400 = vpack.c.b16 %v396, %v394
  %v404 = vsel %vm164, %v398, 0
  %v407 = vsel %vm164, %v400, 0
  %409 = vmatprep.subr.bf16.mxu0 0
  %410 = vmatpush1.bf16.msra.mxu0 %v133
  %411 = vmatprep.subr.bf16.mxu0 0
  %412 = vmatpush1.bf16.msra.mxu0 %v134
  %413 = vmatprep.subr.bf16.mxu0 0
  %414 = vmatpush1.bf16.msra.mxu0 %v135
  %415 = vmatprep.subr.bf16.mxu0 0
  %416 = vmatpush1.bf16.msra.mxu0 %v136
  %417 = vmatprep.subr.bf16.mxu0 0
  %418 = vmatpush1.bf16.msra.mxu0 %v137
  %419 = vmatprep.subr.bf16.mxu0 0
  %420 = vmatpush1.bf16.msra.mxu0 %v138
  %421 = vmatprep.subr.bf16.mxu0 0
  %422 = vmatpush1.bf16.msra.mxu0 %v139
  %423 = vmatprep.subr.bf16.mxu0 0
  %424 = vmatpush1.bf16.msra.mxu0 %v140
  %425 = vmatprep.subr.bf16.mxu0 0
  %426 = vmatpush1.bf16.msra.mxu0 %v141
  %427 = vmatprep.subr.bf16.mxu0 0
  %428 = vmatpush1.bf16.msra.mxu0 %v142
  %429 = vmatprep.subr.bf16.mxu0 0
  %430 = vmatpush1.bf16.msra.mxu0 %v143
  %431 = vmatprep.subr.bf16.mxu0 0
  %432 = vmatpush1.bf16.msra.mxu0 %v144
  %433 = vmatprep.subr.bf16.mxu0 0
  %434 = vmatpush1.bf16.msra.mxu0 %v145
  %435 = vmatprep.subr.bf16.mxu0 0
  %436 = vmatpush1.bf16.msra.mxu0 %v146
  %437 = vmatprep.subr.bf16.mxu0 0
  %438 = vmatpush1.bf16.msra.mxu0 %v147
  %439 = vmatprep.subr.bf16.mxu0 0
  %440 = vmatpush1.bf16.msra.mxu0 %v173
  %441 = vmatprep.mubr.bf16.mxu0 %v404
  %442 = vmatmul.mubr.bf16.gmra.mrb[0].mxu0 %v397
  %v443 = vpop.f32.mrb[0].mxu0
  %v444 = vadd.f32 0.0, %v443
  %v445 = vpop.f32.mrb[0].mxu0
  %v446 = vpop.f32.mrb[0].mxu0
  %v447 = vadd.f32 0.0, %v446
  %v448 = vpop.f32.mrb[0].mxu0
  %449 = vmatprep.mubr.bf16.mxu0 %v407
  %450 = vmatmul.mubr.bf16.gmra.mrb[0].mxu0 %v399
  %v451 = vpop.f32.mrb[0].mxu0
  %v452 = vadd.f32 0.0, %v451
  %v453 = vpop.f32.mrb[0].mxu0
  %v454 = vpop.f32.mrb[0].mxu0
  %v455 = vadd.f32 0.0, %v454
  %v456 = vpop.f32.mrb[0].mxu0
  %457 = vdwg.mxu0
  %v458 = vmax.f32 %v210, %v288
  %v459 = vmax.f32 %v213, %v291
  %v460 = vmax.f32 %v218, %v296
  %v461 = vmax.f32 %v221, %v299
  %v462 = vmax.f32 %v366, %v444
  %v463 = vmax.f32 %v369, %v447
  %v464 = vmax.f32 %v374, %v452
  %v465 = vmax.f32 %v377, %v455
  %v466 = vmax.f32 %v458, %v462
  %v467 = vmax.f32 %v459, %v463
  %v468 = vmax.f32 %v460, %v464
  %v469 = vmax.f32 %v461, %v465
  %v470 = vld [vmem:[%s2] sm:$0x1]
  %v472 = vlaneseq
  %v473 = vshrl.u32 %v472, 7
  %v474 = vsub.s32 0, %v473
  %v475 = vrot.slane %v470, %v474
  %v477 = vadd.f32 %v466, %v475
  %v478 = vadd.f32 %v467, %v475
  %v479 = vadd.f32 %v468, %v475
  %v480 = vadd.f32 %v469, %v475
  %v481 = vmax.f32 %v477, 0.0
  %v482 = vmax.f32 %v478, 0.0
  %v483 = vmax.f32 %v479, 0.0
  %v484 = vmax.f32 %v480, 0.0
  %v485 = vpack.c.bf16 %v482, %v481
  %v486 = vpack.c.bf16 %v484, %v483
  %v489 = vunpack.c.l.b16 %v485
  %v490 = vunpack.c.h.b16 %v485
  %v491 = vunpack.c.l.b16 %v486
  %v492 = vunpack.c.h.b16 %v486
  %v493 = vpack.c.b16 %v489, %v489
  %v494 = vpack.c.b16 %v490, %v490
  %v495 = vpack.c.b16 %v491, %v491
  %v496 = vpack.c.b16 %v492, %v492
  %vm501 = vcmask 158720
  %502 = vst.msk [vmem:[%s3] sm:$0xf] %vm501, %v493
  %503 = vst.msk [vmem:[%s3 + $0x4] sm:$0xf] %vm501, %v494
  %504 = vst.msk [vmem:[%s3 + $0x8] sm:$0xf] %vm501, %v495
  %505 = vst.msk [vmem:[%s3 + $0xc] sm:$0xf] %vm501, %v496
  // Predicated region
  $region14: #{discriminator_forward.4} parent=0 // pred_check
    _
  $region15: #{discriminator_forward.4} parent=0 // pred_check_branch
    %507 = sbr.rel (0) target = $region17
  $region16: #{discriminator_forward.4} parent=0 // pred_region
    _
  $region17: #{discriminator_forward.4} parent=0 // pred_fallthru
    _
  // Predicated region
  $region18: #{discriminator_forward.4} parent=0 // pred_check
    _
  $region19: #{discriminator_forward.4} parent=0 // pred_check_branch
    %509 = sbr.rel (0) target = $region21
  $region20: #{discriminator_forward.4} parent=0 // pred_region
    _
  $region21: #{discriminator_forward.4} parent=0 // pred_fallthru
    _

</llo_original>
